<compile_context>
chip_gen: v7x
topology: tpu7x:2x2x1
jax: 0.10.0
libtpu: 0.0.40
codegen_flags: <defaults>
</compile_context>

<pallas_src>
import jax
import jax.numpy as jnp
from jax.experimental import pallas as pl
from jax.experimental.pallas import tpu as pltpu

K = 7                 # conv kernel size (fixed by the module)
P = (K - 1) // 2      # zero padding = 3


def spatial_gate_kernel(w_ref, x_ref, o_ref, pad_ref):
    # w_ref  : SMEM (2*K*K,) f32   flattened OIHW conv weight (O=1)
    # x_ref  : VMEM (C, H, W)      one batch image (N dim squeezed out)
    # o_ref  : VMEM (C, H, W)
    # pad_ref: VMEM (2, Hp, Wp) f32 scratch; zero-padded conv input
    C, H, W = x_ref.shape
    _, Hp, Wp = pad_ref.shape

    # ---- ChannelPool: streaming max / mean over C (f32 accumulation) ----
    x0 = x_ref[0].astype(jnp.float32)

    def _reduce(c, carry):
        running_max, running_sum = carry
        xc = x_ref[c].astype(jnp.float32)
        return jnp.maximum(running_max, xc), running_sum + xc

    mx, sm = jax.lax.fori_loop(1, C, _reduce, (x0, x0), unroll=True)
    mean = sm * (1.0 / C)

    # ---- stage pooled maps into the zero-padded scratch ----
    # Rows [H, Hp) and cols [W, Wp) stay zero; the circular rolls below wrap
    # into this zero region at both borders, implementing zero padding.
    pad_ref[...] = jnp.zeros_like(pad_ref)
    pad_ref[0, 0:H, 0:W] = mx
    pad_ref[1, 0:H, 0:W] = mean

    # ---- 7x7 conv: 98 taps of roll + mul + add (no masks / selects) ----
    accs = [jnp.zeros((Hp, Wp), jnp.float32) for _ in range(4)]
    t = 0
    for c in range(2):
        pc = pad_ref[c]                                     # (Hp, Wp), load once
        for kh in range(K):
            sr = (P - kh) % Hp                              # non-negative row shift
            pr = pltpu.roll(pc, shift=sr, axis=0) if sr else pc
            for kw in range(K):
                sc = (P - kw) % Wp                          # non-negative col shift
                tap = pltpu.roll(pr, shift=sc, axis=1) if sc else pr
                wgt = w_ref[c * K * K + kh * K + kw]        # scalar from SMEM
                accs[t % 4] = accs[t % 4] + tap * wgt
                t += 1
    acc = (accs[0] + accs[1]) + (accs[2] + accs[3])

    scale = jax.nn.sigmoid(acc[0:H, 0:W])                   # (H, W) conv output

    # ---- apply the gate channel-by-channel (bounded live ranges) ----
    def _apply(c, carry):
        o_ref[c] = (x_ref[c].astype(jnp.float32) * scale).astype(o_ref.dtype)
        return carry

    jax.lax.fori_loop(0, C, _apply, 0, unroll=True)


def _round_up(a, b):
    return (a + b - 1) // b * b


def spatial_gate(x, conv_weight):
    """x: (N, C, H, W).  conv_weight: (1, 2, 7, 7) OIHW, bias-free."""
    N, C, H, W = x.shape
    Hp = _round_up(H + P, 8)        # sublane-aligned, >= H + 3
    Wp = _round_up(W + P, 128)      # lane-aligned,    >= W + 3
    w_flat = conv_weight.reshape(-1).astype(jnp.float32)    # (98,)

    # Explicit VMEM budget: double-buffered input + output blocks + scratch,
    # with headroom, clamped to stay inside v7x's 64 MiB physical VMEM.
    block_bytes = C * H * W * x.dtype.itemsize
    scratch_bytes = 2 * Hp * Wp * 4
    vmem_limit = int(max(16 * 1024 * 1024,
                         min(64 * 1024 * 1024,
                             4 * block_bytes + scratch_bytes + (2 << 20))))

    return pl.pallas_call(
        spatial_gate_kernel,
        out_shape=jax.ShapeDtypeStruct((N, C, H, W), x.dtype),
        grid=(N,),
        in_specs=[
            pl.BlockSpec(memory_space=pltpu.MemorySpace.SMEM),        # weights
            pl.BlockSpec((None, C, H, W), lambda n: (n, 0, 0, 0)),    # x image
        ],
        out_specs=pl.BlockSpec((None, C, H, W), lambda n: (n, 0, 0, 0)),
        scratch_shapes=[pltpu.VMEM((2, Hp, Wp), jnp.float32)],
        compiler_params=pltpu.CompilerParams(
            dimension_semantics=("parallel",),
            vmem_limit_bytes=vmem_limit,
        ),
    )(w_flat, x)


def spatial_gate_reference(x, conv_weight):
    """Pure-JAX reference matching the PyTorch module."""
    mx = jnp.max(x, axis=1, keepdims=True)
    mean = jnp.mean(x, axis=1, keepdims=True)
    comp = jnp.concatenate([mx, mean], axis=1)               # (N, 2, H, W)
    out = jax.lax.conv_general_dilated(
        comp, conv_weight, window_strides=(1, 1),
        padding=((P, P), (P, P)),
        dimension_numbers=("NCHW", "OIHW", "NCHW"))
    scale = jax.nn.sigmoid(out)                              # (N, 1, H, W)
    return x * scale


if __name__ == "__main__":
    key = jax.random.PRNGKey(0)
    kx, kw = jax.random.split(key)

    N, C, H, W = 2, 4, 16, 16
    x = jax.random.normal(kx, (N, C, H, W), dtype=jnp.float32)
    # Deterministic synthetic init for the 7x7 Conv2d(2 -> 1, bias=False).
    conv_weight = 0.1 * jax.random.normal(kw, (1, 2, 7, 7), dtype=jnp.float32)

    out = jax.block_until_ready(spatial_gate(x, conv_weight))

    ref = spatial_gate_reference(x, conv_weight)
    assert out.shape == ref.shape == (N, C, H, W)
    assert jnp.allclose(out, ref, atol=1e-5, rtol=1e-5), "mismatch vs reference"

    print("KERNEL_OK")
</pallas_src>

<mosaic_0001>
module attributes {stable_mosaic.version = 11 : i64} {
  func.func @spatial_gate_kernel(%arg0: i32, %arg1: memref<98xf32, #tpu.memory_space<smem>>, %arg2: memref<1x4x16x16xf32, #tpu.memory_space<vmem>>, %arg3: memref<1x4x16x16xf32, #tpu.memory_space<vmem>>, %arg4: memref<2x24x128xf32, #tpu.memory_space<vmem>>) attributes {dimension_semantics = [#tpu.dimension_semantics<parallel>], iteration_bounds = array<i64: 2>, scalar_prefetch = 0 : i64, scratch_operands = 1 : i64, tpu.core_type = #tpu.core_type<tc>, window_params = [{transform_indices = @transform_0, window_bounds = array<i64: 98>}, {transform_indices = @transform_1, window_bounds = array<i64: 1, 4, 16, 16>}, {transform_indices = @transform_2, window_bounds = array<i64: 1, 4, 16, 16>}]} {
    %c0 = arith.constant 0 : index
    %c0_0 = arith.constant 0 : index
    %c0_1 = arith.constant 0 : index
    %c0_2 = arith.constant 0 : index
    %0 = vector.load %arg2[%c0, %c0_0, %c0_1, %c0_2] : memref<1x4x16x16xf32, #tpu.memory_space<vmem>>, vector<1x1x16x16xf32>
    %1 = vector.shape_cast %0 : vector<1x1x16x16xf32> to vector<16x16xf32>
    %c1_i32 = arith.constant 1 : i32
    %c0_3 = arith.constant 0 : index
    %2 = arith.index_cast %c1_i32 : i32 to index
    %c0_4 = arith.constant 0 : index
    %c0_5 = arith.constant 0 : index
    %3 = vector.load %arg2[%c0_3, %2, %c0_4, %c0_5] : memref<1x4x16x16xf32, #tpu.memory_space<vmem>>, vector<1x1x16x16xf32>
    %4 = vector.shape_cast %3 : vector<1x1x16x16xf32> to vector<16x16xf32>
    %5 = arith.maximumf %1, %4 : vector<16x16xf32>
    %6 = arith.addf %1, %4 : vector<16x16xf32>
    %c2_i32 = arith.constant 2 : i32
    %c0_6 = arith.constant 0 : index
    %7 = arith.index_cast %c2_i32 : i32 to index
    %c0_7 = arith.constant 0 : index
    %c0_8 = arith.constant 0 : index
    %8 = vector.load %arg2[%c0_6, %7, %c0_7, %c0_8] : memref<1x4x16x16xf32, #tpu.memory_space<vmem>>, vector<1x1x16x16xf32>
    %9 = vector.shape_cast %8 : vector<1x1x16x16xf32> to vector<16x16xf32>
    %10 = arith.maximumf %5, %9 : vector<16x16xf32>
    %11 = arith.addf %6, %9 : vector<16x16xf32>
    %c3_i32 = arith.constant 3 : i32
    %c0_9 = arith.constant 0 : index
    %12 = arith.index_cast %c3_i32 : i32 to index
    %c0_10 = arith.constant 0 : index
    %c0_11 = arith.constant 0 : index
    %13 = vector.load %arg2[%c0_9, %12, %c0_10, %c0_11] : memref<1x4x16x16xf32, #tpu.memory_space<vmem>>, vector<1x1x16x16xf32>
    %14 = vector.shape_cast %13 : vector<1x1x16x16xf32> to vector<16x16xf32>
    %15 = arith.maximumf %10, %14 : vector<16x16xf32>
    %16 = arith.addf %11, %14 : vector<16x16xf32>
    %c3_i32_12 = arith.constant 3 : i32
    %cst = arith.constant 2.500000e-01 : f32
    %17 = vector.broadcast %cst : f32 to vector<16x16xf32>
    %18 = arith.mulf %16, %17 : vector<16x16xf32>
    %cst_13 = arith.constant 0.000000e+00 : f32
    %19 = vector.broadcast %cst_13 : f32 to vector<2x24x128xf32>
    %c0_14 = arith.constant 0 : index
    %c0_15 = arith.constant 0 : index
    %c0_16 = arith.constant 0 : index
    %20 = vector.load %arg4[%c0_14, %c0_15, %c0_16] : memref<2x24x128xf32, #tpu.memory_space<vmem>>, vector<2x24x128xf32>
    tpu.vector_store %arg4[%c0_14, %c0_15, %c0_16], %19 {strides = array<i32>} : memref<2x24x128xf32, #tpu.memory_space<vmem>>, vector<2x24x128xf32>,
    %c0_17 = arith.constant 0 : index
    %c0_18 = arith.constant 0 : index
    %c0_19 = arith.constant 0 : index
    %21 = vector.load %arg4[%c0_17, %c0_18, %c0_19] : memref<2x24x128xf32, #tpu.memory_space<vmem>>, vector<1x16x16xf32>
    %22 = vector.shape_cast %21 : vector<1x16x16xf32> to vector<16x16xf32>
    %23 = vector.shape_cast %15 : vector<16x16xf32> to vector<1x16x16xf32>
    tpu.vector_store %arg4[%c0_17, %c0_18, %c0_19], %23 {strides = array<i32>} : memref<2x24x128xf32, #tpu.memory_space<vmem>>, vector<1x16x16xf32>,
    %c1 = arith.constant 1 : index
    %c0_20 = arith.constant 0 : index
    %c0_21 = arith.constant 0 : index
    %24 = vector.load %arg4[%c1, %c0_20, %c0_21] : memref<2x24x128xf32, #tpu.memory_space<vmem>>, vector<1x16x16xf32>
    %25 = vector.shape_cast %24 : vector<1x16x16xf32> to vector<16x16xf32>
    %26 = vector.shape_cast %18 : vector<16x16xf32> to vector<1x16x16xf32>
    tpu.vector_store %arg4[%c1, %c0_20, %c0_21], %26 {strides = array<i32>} : memref<2x24x128xf32, #tpu.memory_space<vmem>>, vector<1x16x16xf32>,
    %cst_22 = arith.constant 0.000000e+00 : f32
    %27 = vector.broadcast %cst_22 : f32 to vector<24x128xf32>
    %cst_23 = arith.constant 0.000000e+00 : f32
    %28 = vector.broadcast %cst_23 : f32 to vector<24x128xf32>
    %cst_24 = arith.constant 0.000000e+00 : f32
    %29 = vector.broadcast %cst_24 : f32 to vector<24x128xf32>
    %cst_25 = arith.constant 0.000000e+00 : f32
    %30 = vector.broadcast %cst_25 : f32 to vector<24x128xf32>
    %c0_26 = arith.constant 0 : index
    %c0_27 = arith.constant 0 : index
    %c0_28 = arith.constant 0 : index
    %31 = vector.load %arg4[%c0_26, %c0_27, %c0_28] : memref<2x24x128xf32, #tpu.memory_space<vmem>>, vector<1x24x128xf32>
    %32 = vector.shape_cast %31 : vector<1x24x128xf32> to vector<24x128xf32>
    %c3_i32_29 = arith.constant 3 : i32
    %33 = tpu.dynamic_rotate %32 by %c3_i32_29 dim 0 : vector<24x128xf32>, i32 -> vector<24x128xf32>
    %c3_i32_30 = arith.constant 3 : i32
    %34 = tpu.dynamic_rotate %33 by %c3_i32_30 dim 1 : vector<24x128xf32>, i32 -> vector<24x128xf32>
    %c0_31 = arith.constant 0 : index
    %35 = memref.load %arg1[%c0_31] : memref<98xf32, #tpu.memory_space<smem>>
    %36 = vector.broadcast %35 : f32 to vector<24x128xf32>
    %37 = arith.mulf %34, %36 : vector<24x128xf32>
    %38 = arith.addf %27, %37 : vector<24x128xf32>
    %c2_i32_32 = arith.constant 2 : i32
    %39 = tpu.dynamic_rotate %33 by %c2_i32_32 dim 1 : vector<24x128xf32>, i32 -> vector<24x128xf32>
    %c1_33 = arith.constant 1 : index
    %40 = memref.load %arg1[%c1_33] : memref<98xf32, #tpu.memory_space<smem>>
    %41 = vector.broadcast %40 : f32 to vector<24x128xf32>
    %42 = arith.mulf %39, %41 : vector<24x128xf32>
    %43 = arith.addf %28, %42 : vector<24x128xf32>
    %c1_i32_34 = arith.constant 1 : i32
    %44 = tpu.dynamic_rotate %33 by %c1_i32_34 dim 1 : vector<24x128xf32>, i32 -> vector<24x128xf32>
    %c2 = arith.constant 2 : index
    %45 = memref.load %arg1[%c2] : memref<98xf32, #tpu.memory_space<smem>>
    %46 = vector.broadcast %45 : f32 to vector<24x128xf32>
    %47 = arith.mulf %44, %46 : vector<24x128xf32>
    %48 = arith.addf %29, %47 : vector<24x128xf32>
    %c3 = arith.constant 3 : index
    %49 = memref.load %arg1[%c3] : memref<98xf32, #tpu.memory_space<smem>>
    %50 = vector.broadcast %49 : f32 to vector<24x128xf32>
    %51 = arith.mulf %33, %50 : vector<24x128xf32>
    %52 = arith.addf %30, %51 : vector<24x128xf32>
    %c127_i32 = arith.constant 127 : i32
    %53 = tpu.dynamic_rotate %33 by %c127_i32 dim 1 : vector<24x128xf32>, i32 -> vector<24x128xf32>
    %c4 = arith.constant 4 : index
    %54 = memref.load %arg1[%c4] : memref<98xf32, #tpu.memory_space<smem>>
    %55 = vector.broadcast %54 : f32 to vector<24x128xf32>
    %56 = arith.mulf %53, %55 : vector<24x128xf32>
    %57 = arith.addf %38, %56 : vector<24x128xf32>
    %c126_i32 = arith.constant 126 : i32
    %58 = tpu.dynamic_rotate %33 by %c126_i32 dim 1 : vector<24x128xf32>, i32 -> vector<24x128xf32>
    %c5 = arith.constant 5 : index
    %59 = memref.load %arg1[%c5] : memref<98xf32, #tpu.memory_space<smem>>
    %60 = vector.broadcast %59 : f32 to vector<24x128xf32>
    %61 = arith.mulf %58, %60 : vector<24x128xf32>
    %62 = arith.addf %43, %61 : vector<24x128xf32>
    %c125_i32 = arith.constant 125 : i32
    %63 = tpu.dynamic_rotate %33 by %c125_i32 dim 1 : vector<24x128xf32>, i32 -> vector<24x128xf32>
    %c6 = arith.constant 6 : index
    %64 = memref.load %arg1[%c6] : memref<98xf32, #tpu.memory_space<smem>>
    %65 = vector.broadcast %64 : f32 to vector<24x128xf32>
    %66 = arith.mulf %63, %65 : vector<24x128xf32>
    %67 = arith.addf %48, %66 : vector<24x128xf32>
    %c2_i32_35 = arith.constant 2 : i32
    %68 = tpu.dynamic_rotate %32 by %c2_i32_35 dim 0 : vector<24x128xf32>, i32 -> vector<24x128xf32>
    %c3_i32_36 = arith.constant 3 : i32
    %69 = tpu.dynamic_rotate %68 by %c3_i32_36 dim 1 : vector<24x128xf32>, i32 -> vector<24x128xf32>
    %c7 = arith.constant 7 : index
    %70 = memref.load %arg1[%c7] : memref<98xf32, #tpu.memory_space<smem>>
    %71 = vector.broadcast %70 : f32 to vector<24x128xf32>
    %72 = arith.mulf %69, %71 : vector<24x128xf32>
    %73 = arith.addf %52, %72 : vector<24x128xf32>
    %c2_i32_37 = arith.constant 2 : i32
    %74 = tpu.dynamic_rotate %68 by %c2_i32_37 dim 1 : vector<24x128xf32>, i32 -> vector<24x128xf32>
    %c8 = arith.constant 8 : index
    %75 = memref.load %arg1[%c8] : memref<98xf32, #tpu.memory_space<smem>>
    %76 = vector.broadcast %75 : f32 to vector<24x128xf32>
    %77 = arith.mulf %74, %76 : vector<24x128xf32>
    %78 = arith.addf %57, %77 : vector<24x128xf32>
    %c1_i32_38 = arith.constant 1 : i32
    %79 = tpu.dynamic_rotate %68 by %c1_i32_38 dim 1 : vector<24x128xf32>, i32 -> vector<24x128xf32>
    %c9 = arith.constant 9 : index
    %80 = memref.load %arg1[%c9] : memref<98xf32, #tpu.memory_space<smem>>
    %81 = vector.broadcast %80 : f32 to vector<24x128xf32>
    %82 = arith.mulf %79, %81 : vector<24x128xf32>
    %83 = arith.addf %62, %82 : vector<24x128xf32>
    %c10 = arith.constant 10 : index
    %84 = memref.load %arg1[%c10] : memref<98xf32, #tpu.memory_space<smem>>
    %85 = vector.broadcast %84 : f32 to vector<24x128xf32>
    %86 = arith.mulf %68, %85 : vector<24x128xf32>
    %87 = arith.addf %67, %86 : vector<24x128xf32>
    %c127_i32_39 = arith.constant 127 : i32
    %88 = tpu.dynamic_rotate %68 by %c127_i32_39 dim 1 : vector<24x128xf32>, i32 -> vector<24x128xf32>
    %c11 = arith.constant 11 : index
    %89 = memref.load %arg1[%c11] : memref<98xf32, #tpu.memory_space<smem>>
    %90 = vector.broadcast %89 : f32 to vector<24x128xf32>
    %91 = arith.mulf %88, %90 : vector<24x128xf32>
    %92 = arith.addf %73, %91 : vector<24x128xf32>
    %c126_i32_40 = arith.constant 126 : i32
    %93 = tpu.dynamic_rotate %68 by %c126_i32_40 dim 1 : vector<24x128xf32>, i32 -> vector<24x128xf32>
    %c12 = arith.constant 12 : index
    %94 = memref.load %arg1[%c12] : memref<98xf32, #tpu.memory_space<smem>>
    %95 = vector.broadcast %94 : f32 to vector<24x128xf32>
    %96 = arith.mulf %93, %95 : vector<24x128xf32>
    %97 = arith.addf %78, %96 : vector<24x128xf32>
    %c125_i32_41 = arith.constant 125 : i32
    %98 = tpu.dynamic_rotate %68 by %c125_i32_41 dim 1 : vector<24x128xf32>, i32 -> vector<24x128xf32>
    %c13 = arith.constant 13 : index
    %99 = memref.load %arg1[%c13] : memref<98xf32, #tpu.memory_space<smem>>
    %100 = vector.broadcast %99 : f32 to vector<24x128xf32>
    %101 = arith.mulf %98, %100 : vector<24x128xf32>
    %102 = arith.addf %83, %101 : vector<24x128xf32>
    %c1_i32_42 = arith.constant 1 : i32
    %103 = tpu.dynamic_rotate %32 by %c1_i32_42 dim 0 : vector<24x128xf32>, i32 -> vector<24x128xf32>
    %c3_i32_43 = arith.constant 3 : i32
    %104 = tpu.dynamic_rotate %103 by %c3_i32_43 dim 1 : vector<24x128xf32>, i32 -> vector<24x128xf32>
    %c14 = arith.constant 14 : index
    %105 = memref.load %arg1[%c14] : memref<98xf32, #tpu.memory_space<smem>>
    %106 = vector.broadcast %105 : f32 to vector<24x128xf32>
    %107 = arith.mulf %104, %106 : vector<24x128xf32>
    %108 = arith.addf %87, %107 : vector<24x128xf32>
    %c2_i32_44 = arith.constant 2 : i32
    %109 = tpu.dynamic_rotate %103 by %c2_i32_44 dim 1 : vector<24x128xf32>, i32 -> vector<24x128xf32>
    %c15 = arith.constant 15 : index
    %110 = memref.load %arg1[%c15] : memref<98xf32, #tpu.memory_space<smem>>
    %111 = vector.broadcast %110 : f32 to vector<24x128xf32>
    %112 = arith.mulf %109, %111 : vector<24x128xf32>
    %113 = arith.addf %92, %112 : vector<24x128xf32>
    %c1_i32_45 = arith.constant 1 : i32
    %114 = tpu.dynamic_rotate %103 by %c1_i32_45 dim 1 : vector<24x128xf32>, i32 -> vector<24x128xf32>
    %c16 = arith.constant 16 : index
    %115 = memref.load %arg1[%c16] : memref<98xf32, #tpu.memory_space<smem>>
    %116 = vector.broadcast %115 : f32 to vector<24x128xf32>
    %117 = arith.mulf %114, %116 : vector<24x128xf32>
    %118 = arith.addf %97, %117 : vector<24x128xf32>
    %c17 = arith.constant 17 : index
    %119 = memref.load %arg1[%c17] : memref<98xf32, #tpu.memory_space<smem>>
    %120 = vector.broadcast %119 : f32 to vector<24x128xf32>
    %121 = arith.mulf %103, %120 : vector<24x128xf32>
    %122 = arith.addf %102, %121 : vector<24x128xf32>
    %c127_i32_46 = arith.constant 127 : i32
    %123 = tpu.dynamic_rotate %103 by %c127_i32_46 dim 1 : vector<24x128xf32>, i32 -> vector<24x128xf32>
    %c18 = arith.constant 18 : index
    %124 = memref.load %arg1[%c18] : memref<98xf32, #tpu.memory_space<smem>>
    %125 = vector.broadcast %124 : f32 to vector<24x128xf32>
    %126 = arith.mulf %123, %125 : vector<24x128xf32>
    %127 = arith.addf %108, %126 : vector<24x128xf32>
    %c126_i32_47 = arith.constant 126 : i32
    %128 = tpu.dynamic_rotate %103 by %c126_i32_47 dim 1 : vector<24x128xf32>, i32 -> vector<24x128xf32>
    %c19 = arith.constant 19 : index
    %129 = memref.load %arg1[%c19] : memref<98xf32, #tpu.memory_space<smem>>
    %130 = vector.broadcast %129 : f32 to vector<24x128xf32>
    %131 = arith.mulf %128, %130 : vector<24x128xf32>
    %132 = arith.addf %113, %131 : vector<24x128xf32>
    %c125_i32_48 = arith.constant 125 : i32
    %133 = tpu.dynamic_rotate %103 by %c125_i32_48 dim 1 : vector<24x128xf32>, i32 -> vector<24x128xf32>
    %c20 = arith.constant 20 : index
    %134 = memref.load %arg1[%c20] : memref<98xf32, #tpu.memory_space<smem>>
    %135 = vector.broadcast %134 : f32 to vector<24x128xf32>
    %136 = arith.mulf %133, %135 : vector<24x128xf32>
    %137 = arith.addf %118, %136 : vector<24x128xf32>
    %c3_i32_49 = arith.constant 3 : i32
    %138 = tpu.dynamic_rotate %32 by %c3_i32_49 dim 1 : vector<24x128xf32>, i32 -> vector<24x128xf32>
    %c21 = arith.constant 21 : index
    %139 = memref.load %arg1[%c21] : memref<98xf32, #tpu.memory_space<smem>>
    %140 = vector.broadcast %139 : f32 to vector<24x128xf32>
    %141 = arith.mulf %138, %140 : vector<24x128xf32>
    %142 = arith.addf %122, %141 : vector<24x128xf32>
    %c2_i32_50 = arith.constant 2 : i32
    %143 = tpu.dynamic_rotate %32 by %c2_i32_50 dim 1 : vector<24x128xf32>, i32 -> vector<24x128xf32>
    %c22 = arith.constant 22 : index
    %144 = memref.load %arg1[%c22] : memref<98xf32, #tpu.memory_space<smem>>
    %145 = vector.broadcast %144 : f32 to vector<24x128xf32>
    %146 = arith.mulf %143, %145 : vector<24x128xf32>
    %147 = arith.addf %127, %146 : vector<24x128xf32>
    %c1_i32_51 = arith.constant 1 : i32
    %148 = tpu.dynamic_rotate %32 by %c1_i32_51 dim 1 : vector<24x128xf32>, i32 -> vector<24x128xf32>
    %c23 = arith.constant 23 : index
    %149 = memref.load %arg1[%c23] : memref<98xf32, #tpu.memory_space<smem>>
    %150 = vector.broadcast %149 : f32 to vector<24x128xf32>
    %151 = arith.mulf %148, %150 : vector<24x128xf32>
    %152 = arith.addf %132, %151 : vector<24x128xf32>
    %c24 = arith.constant 24 : index
    %153 = memref.load %arg1[%c24] : memref<98xf32, #tpu.memory_space<smem>>
    %154 = vector.broadcast %153 : f32 to vector<24x128xf32>
    %155 = arith.mulf %32, %154 : vector<24x128xf32>
    %156 = arith.addf %137, %155 : vector<24x128xf32>
    %c127_i32_52 = arith.constant 127 : i32
    %157 = tpu.dynamic_rotate %32 by %c127_i32_52 dim 1 : vector<24x128xf32>, i32 -> vector<24x128xf32>
    %c25 = arith.constant 25 : index
    %158 = memref.load %arg1[%c25] : memref<98xf32, #tpu.memory_space<smem>>
    %159 = vector.broadcast %158 : f32 to vector<24x128xf32>
    %160 = arith.mulf %157, %159 : vector<24x128xf32>
    %161 = arith.addf %142, %160 : vector<24x128xf32>
    %c126_i32_53 = arith.constant 126 : i32
    %162 = tpu.dynamic_rotate %32 by %c126_i32_53 dim 1 : vector<24x128xf32>, i32 -> vector<24x128xf32>
    %c26 = arith.constant 26 : index
    %163 = memref.load %arg1[%c26] : memref<98xf32, #tpu.memory_space<smem>>
    %164 = vector.broadcast %163 : f32 to vector<24x128xf32>
    %165 = arith.mulf %162, %164 : vector<24x128xf32>
    %166 = arith.addf %147, %165 : vector<24x128xf32>
    %c125_i32_54 = arith.constant 125 : i32
    %167 = tpu.dynamic_rotate %32 by %c125_i32_54 dim 1 : vector<24x128xf32>, i32 -> vector<24x128xf32>
    %c27 = arith.constant 27 : index
    %168 = memref.load %arg1[%c27] : memref<98xf32, #tpu.memory_space<smem>>
    %169 = vector.broadcast %168 : f32 to vector<24x128xf32>
    %170 = arith.mulf %167, %169 : vector<24x128xf32>
    %171 = arith.addf %152, %170 : vector<24x128xf32>
    %c23_i32 = arith.constant 23 : i32
    %172 = tpu.dynamic_rotate %32 by %c23_i32 dim 0 : vector<24x128xf32>, i32 -> vector<24x128xf32>
    %c3_i32_55 = arith.constant 3 : i32
    %173 = tpu.dynamic_rotate %172 by %c3_i32_55 dim 1 : vector<24x128xf32>, i32 -> vector<24x128xf32>
    %c28 = arith.constant 28 : index
    %174 = memref.load %arg1[%c28] : memref<98xf32, #tpu.memory_space<smem>>
    %175 = vector.broadcast %174 : f32 to vector<24x128xf32>
    %176 = arith.mulf %173, %175 : vector<24x128xf32>
    %177 = arith.addf %156, %176 : vector<24x128xf32>
    %c2_i32_56 = arith.constant 2 : i32
    %178 = tpu.dynamic_rotate %172 by %c2_i32_56 dim 1 : vector<24x128xf32>, i32 -> vector<24x128xf32>
    %c29 = arith.constant 29 : index
    %179 = memref.load %arg1[%c29] : memref<98xf32, #tpu.memory_space<smem>>
    %180 = vector.broadcast %179 : f32 to vector<24x128xf32>
    %181 = arith.mulf %178, %180 : vector<24x128xf32>
    %182 = arith.addf %161, %181 : vector<24x128xf32>
    %c1_i32_57 = arith.constant 1 : i32
    %183 = tpu.dynamic_rotate %172 by %c1_i32_57 dim 1 : vector<24x128xf32>, i32 -> vector<24x128xf32>
    %c30 = arith.constant 30 : index
    %184 = memref.load %arg1[%c30] : memref<98xf32, #tpu.memory_space<smem>>
    %185 = vector.broadcast %184 : f32 to vector<24x128xf32>
    %186 = arith.mulf %183, %185 : vector<24x128xf32>
    %187 = arith.addf %166, %186 : vector<24x128xf32>
    %c31 = arith.constant 31 : index
    %188 = memref.load %arg1[%c31] : memref<98xf32, #tpu.memory_space<smem>>
    %189 = vector.broadcast %188 : f32 to vector<24x128xf32>
    %190 = arith.mulf %172, %189 : vector<24x128xf32>
    %191 = arith.addf %171, %190 : vector<24x128xf32>
    %c127_i32_58 = arith.constant 127 : i32
    %192 = tpu.dynamic_rotate %172 by %c127_i32_58 dim 1 : vector<24x128xf32>, i32 -> vector<24x128xf32>
    %c32 = arith.constant 32 : index
    %193 = memref.load %arg1[%c32] : memref<98xf32, #tpu.memory_space<smem>>
    %194 = vector.broadcast %193 : f32 to vector<24x128xf32>
    %195 = arith.mulf %192, %194 : vector<24x128xf32>
    %196 = arith.addf %177, %195 : vector<24x128xf32>
    %c126_i32_59 = arith.constant 126 : i32
    %197 = tpu.dynamic_rotate %172 by %c126_i32_59 dim 1 : vector<24x128xf32>, i32 -> vector<24x128xf32>
    %c33 = arith.constant 33 : index
    %198 = memref.load %arg1[%c33] : memref<98xf32, #tpu.memory_space<smem>>
    %199 = vector.broadcast %198 : f32 to vector<24x128xf32>
    %200 = arith.mulf %197, %199 : vector<24x128xf32>
    %201 = arith.addf %182, %200 : vector<24x128xf32>
    %c125_i32_60 = arith.constant 125 : i32
    %202 = tpu.dynamic_rotate %172 by %c125_i32_60 dim 1 : vector<24x128xf32>, i32 -> vector<24x128xf32>
    %c34 = arith.constant 34 : index
    %203 = memref.load %arg1[%c34] : memref<98xf32, #tpu.memory_space<smem>>
    %204 = vector.broadcast %203 : f32 to vector<24x128xf32>
    %205 = arith.mulf %202, %204 : vector<24x128xf32>
    %206 = arith.addf %187, %205 : vector<24x128xf32>
    %c22_i32 = arith.constant 22 : i32
    %207 = tpu.dynamic_rotate %32 by %c22_i32 dim 0 : vector<24x128xf32>, i32 -> vector<24x128xf32>
    %c3_i32_61 = arith.constant 3 : i32
    %208 = tpu.dynamic_rotate %207 by %c3_i32_61 dim 1 : vector<24x128xf32>, i32 -> vector<24x128xf32>
    %c35 = arith.constant 35 : index
    %209 = memref.load %arg1[%c35] : memref<98xf32, #tpu.memory_space<smem>>
    %210 = vector.broadcast %209 : f32 to vector<24x128xf32>
    %211 = arith.mulf %208, %210 : vector<24x128xf32>
    %212 = arith.addf %191, %211 : vector<24x128xf32>
    %c2_i32_62 = arith.constant 2 : i32
    %213 = tpu.dynamic_rotate %207 by %c2_i32_62 dim 1 : vector<24x128xf32>, i32 -> vector<24x128xf32>
    %c36 = arith.constant 36 : index
    %214 = memref.load %arg1[%c36] : memref<98xf32, #tpu.memory_space<smem>>
    %215 = vector.broadcast %214 : f32 to vector<24x128xf32>
    %216 = arith.mulf %213, %215 : vector<24x128xf32>
    %217 = arith.addf %196, %216 : vector<24x128xf32>
    %c1_i32_63 = arith.constant 1 : i32
    %218 = tpu.dynamic_rotate %207 by %c1_i32_63 dim 1 : vector<24x128xf32>, i32 -> vector<24x128xf32>
    %c37 = arith.constant 37 : index
    %219 = memref.load %arg1[%c37] : memref<98xf32, #tpu.memory_space<smem>>
    %220 = vector.broadcast %219 : f32 to vector<24x128xf32>
    %221 = arith.mulf %218, %220 : vector<24x128xf32>
    %222 = arith.addf %201, %221 : vector<24x128xf32>
    %c38 = arith.constant 38 : index
    %223 = memref.load %arg1[%c38] : memref<98xf32, #tpu.memory_space<smem>>
    %224 = vector.broadcast %223 : f32 to vector<24x128xf32>
    %225 = arith.mulf %207, %224 : vector<24x128xf32>
    %226 = arith.addf %206, %225 : vector<24x128xf32>
    %c127_i32_64 = arith.constant 127 : i32
    %227 = tpu.dynamic_rotate %207 by %c127_i32_64 dim 1 : vector<24x128xf32>, i32 -> vector<24x128xf32>
    %c39 = arith.constant 39 : index
    %228 = memref.load %arg1[%c39] : memref<98xf32, #tpu.memory_space<smem>>
    %229 = vector.broadcast %228 : f32 to vector<24x128xf32>
    %230 = arith.mulf %227, %229 : vector<24x128xf32>
    %231 = arith.addf %212, %230 : vector<24x128xf32>
    %c126_i32_65 = arith.constant 126 : i32
    %232 = tpu.dynamic_rotate %207 by %c126_i32_65 dim 1 : vector<24x128xf32>, i32 -> vector<24x128xf32>
    %c40 = arith.constant 40 : index
    %233 = memref.load %arg1[%c40] : memref<98xf32, #tpu.memory_space<smem>>
    %234 = vector.broadcast %233 : f32 to vector<24x128xf32>
    %235 = arith.mulf %232, %234 : vector<24x128xf32>
    %236 = arith.addf %217, %235 : vector<24x128xf32>
    %c125_i32_66 = arith.constant 125 : i32
    %237 = tpu.dynamic_rotate %207 by %c125_i32_66 dim 1 : vector<24x128xf32>, i32 -> vector<24x128xf32>
    %c41 = arith.constant 41 : index
    %238 = memref.load %arg1[%c41] : memref<98xf32, #tpu.memory_space<smem>>
    %239 = vector.broadcast %238 : f32 to vector<24x128xf32>
    %240 = arith.mulf %237, %239 : vector<24x128xf32>
    %241 = arith.addf %222, %240 : vector<24x128xf32>
    %c21_i32 = arith.constant 21 : i32
    %242 = tpu.dynamic_rotate %32 by %c21_i32 dim 0 : vector<24x128xf32>, i32 -> vector<24x128xf32>
    %c3_i32_67 = arith.constant 3 : i32
    %243 = tpu.dynamic_rotate %242 by %c3_i32_67 dim 1 : vector<24x128xf32>, i32 -> vector<24x128xf32>
    %c42 = arith.constant 42 : index
    %244 = memref.load %arg1[%c42] : memref<98xf32, #tpu.memory_space<smem>>
    %245 = vector.broadcast %244 : f32 to vector<24x128xf32>
    %246 = arith.mulf %243, %245 : vector<24x128xf32>
    %247 = arith.addf %226, %246 : vector<24x128xf32>
    %c2_i32_68 = arith.constant 2 : i32
    %248 = tpu.dynamic_rotate %242 by %c2_i32_68 dim 1 : vector<24x128xf32>, i32 -> vector<24x128xf32>
    %c43 = arith.constant 43 : index
    %249 = memref.load %arg1[%c43] : memref<98xf32, #tpu.memory_space<smem>>
    %250 = vector.broadcast %249 : f32 to vector<24x128xf32>
    %251 = arith.mulf %248, %250 : vector<24x128xf32>
    %252 = arith.addf %231, %251 : vector<24x128xf32>
    %c1_i32_69 = arith.constant 1 : i32
    %253 = tpu.dynamic_rotate %242 by %c1_i32_69 dim 1 : vector<24x128xf32>, i32 -> vector<24x128xf32>
    %c44 = arith.constant 44 : index
    %254 = memref.load %arg1[%c44] : memref<98xf32, #tpu.memory_space<smem>>
    %255 = vector.broadcast %254 : f32 to vector<24x128xf32>
    %256 = arith.mulf %253, %255 : vector<24x128xf32>
    %257 = arith.addf %236, %256 : vector<24x128xf32>
    %c45 = arith.constant 45 : index
    %258 = memref.load %arg1[%c45] : memref<98xf32, #tpu.memory_space<smem>>
    %259 = vector.broadcast %258 : f32 to vector<24x128xf32>
    %260 = arith.mulf %242, %259 : vector<24x128xf32>
    %261 = arith.addf %241, %260 : vector<24x128xf32>
    %c127_i32_70 = arith.constant 127 : i32
    %262 = tpu.dynamic_rotate %242 by %c127_i32_70 dim 1 : vector<24x128xf32>, i32 -> vector<24x128xf32>
    %c46 = arith.constant 46 : index
    %263 = memref.load %arg1[%c46] : memref<98xf32, #tpu.memory_space<smem>>
    %264 = vector.broadcast %263 : f32 to vector<24x128xf32>
    %265 = arith.mulf %262, %264 : vector<24x128xf32>
    %266 = arith.addf %247, %265 : vector<24x128xf32>
    %c126_i32_71 = arith.constant 126 : i32
    %267 = tpu.dynamic_rotate %242 by %c126_i32_71 dim 1 : vector<24x128xf32>, i32 -> vector<24x128xf32>
    %c47 = arith.constant 47 : index
    %268 = memref.load %arg1[%c47] : memref<98xf32, #tpu.memory_space<smem>>
    %269 = vector.broadcast %268 : f32 to vector<24x128xf32>
    %270 = arith.mulf %267, %269 : vector<24x128xf32>
    %271 = arith.addf %252, %270 : vector<24x128xf32>
    %c125_i32_72 = arith.constant 125 : i32
    %272 = tpu.dynamic_rotate %242 by %c125_i32_72 dim 1 : vector<24x128xf32>, i32 -> vector<24x128xf32>
    %c48 = arith.constant 48 : index
    %273 = memref.load %arg1[%c48] : memref<98xf32, #tpu.memory_space<smem>>
    %274 = vector.broadcast %273 : f32 to vector<24x128xf32>
    %275 = arith.mulf %272, %274 : vector<24x128xf32>
    %276 = arith.addf %257, %275 : vector<24x128xf32>
    %c1_73 = arith.constant 1 : index
    %c0_74 = arith.constant 0 : index
    %c0_75 = arith.constant 0 : index
    %277 = vector.load %arg4[%c1_73, %c0_74, %c0_75] : memref<2x24x128xf32, #tpu.memory_space<vmem>>, vector<1x24x128xf32>
    %278 = vector.shape_cast %277 : vector<1x24x128xf32> to vector<24x128xf32>
    %c3_i32_76 = arith.constant 3 : i32
    %279 = tpu.dynamic_rotate %278 by %c3_i32_76 dim 0 : vector<24x128xf32>, i32 -> vector<24x128xf32>
    %c3_i32_77 = arith.constant 3 : i32
    %280 = tpu.dynamic_rotate %279 by %c3_i32_77 dim 1 : vector<24x128xf32>, i32 -> vector<24x128xf32>
    %c49 = arith.constant 49 : index
    %281 = memref.load %arg1[%c49] : memref<98xf32, #tpu.memory_space<smem>>
    %282 = vector.broadcast %281 : f32 to vector<24x128xf32>
    %283 = arith.mulf %280, %282 : vector<24x128xf32>
    %284 = arith.addf %261, %283 : vector<24x128xf32>
    %c2_i32_78 = arith.constant 2 : i32
    %285 = tpu.dynamic_rotate %279 by %c2_i32_78 dim 1 : vector<24x128xf32>, i32 -> vector<24x128xf32>
    %c50 = arith.constant 50 : index
    %286 = memref.load %arg1[%c50] : memref<98xf32, #tpu.memory_space<smem>>
    %287 = vector.broadcast %286 : f32 to vector<24x128xf32>
    %288 = arith.mulf %285, %287 : vector<24x128xf32>
    %289 = arith.addf %266, %288 : vector<24x128xf32>
    %c1_i32_79 = arith.constant 1 : i32
    %290 = tpu.dynamic_rotate %279 by %c1_i32_79 dim 1 : vector<24x128xf32>, i32 -> vector<24x128xf32>
    %c51 = arith.constant 51 : index
    %291 = memref.load %arg1[%c51] : memref<98xf32, #tpu.memory_space<smem>>
    %292 = vector.broadcast %291 : f32 to vector<24x128xf32>
    %293 = arith.mulf %290, %292 : vector<24x128xf32>
    %294 = arith.addf %271, %293 : vector<24x128xf32>
    %c52 = arith.constant 52 : index
    %295 = memref.load %arg1[%c52] : memref<98xf32, #tpu.memory_space<smem>>
    %296 = vector.broadcast %295 : f32 to vector<24x128xf32>
    %297 = arith.mulf %279, %296 : vector<24x128xf32>
    %298 = arith.addf %276, %297 : vector<24x128xf32>
    %c127_i32_80 = arith.constant 127 : i32
    %299 = tpu.dynamic_rotate %279 by %c127_i32_80 dim 1 : vector<24x128xf32>, i32 -> vector<24x128xf32>
    %c53 = arith.constant 53 : index
    %300 = memref.load %arg1[%c53] : memref<98xf32, #tpu.memory_space<smem>>
    %301 = vector.broadcast %300 : f32 to vector<24x128xf32>
    %302 = arith.mulf %299, %301 : vector<24x128xf32>
    %303 = arith.addf %284, %302 : vector<24x128xf32>
    %c126_i32_81 = arith.constant 126 : i32
    %304 = tpu.dynamic_rotate %279 by %c126_i32_81 dim 1 : vector<24x128xf32>, i32 -> vector<24x128xf32>
    %c54 = arith.constant 54 : index
    %305 = memref.load %arg1[%c54] : memref<98xf32, #tpu.memory_space<smem>>
    %306 = vector.broadcast %305 : f32 to vector<24x128xf32>
    %307 = arith.mulf %304, %306 : vector<24x128xf32>
    %308 = arith.addf %289, %307 : vector<24x128xf32>
    %c125_i32_82 = arith.constant 125 : i32
    %309 = tpu.dynamic_rotate %279 by %c125_i32_82 dim 1 : vector<24x128xf32>, i32 -> vector<24x128xf32>
    %c55 = arith.constant 55 : index
    %310 = memref.load %arg1[%c55] : memref<98xf32, #tpu.memory_space<smem>>
    %311 = vector.broadcast %310 : f32 to vector<24x128xf32>
    %312 = arith.mulf %309, %311 : vector<24x128xf32>
    %313 = arith.addf %294, %312 : vector<24x128xf32>
    %c2_i32_83 = arith.constant 2 : i32
    %314 = tpu.dynamic_rotate %278 by %c2_i32_83 dim 0 : vector<24x128xf32>, i32 -> vector<24x128xf32>
    %c3_i32_84 = arith.constant 3 : i32
    %315 = tpu.dynamic_rotate %314 by %c3_i32_84 dim 1 : vector<24x128xf32>, i32 -> vector<24x128xf32>
    %c56 = arith.constant 56 : index
    %316 = memref.load %arg1[%c56] : memref<98xf32, #tpu.memory_space<smem>>
    %317 = vector.broadcast %316 : f32 to vector<24x128xf32>
    %318 = arith.mulf %315, %317 : vector<24x128xf32>
    %319 = arith.addf %298, %318 : vector<24x128xf32>
    %c2_i32_85 = arith.constant 2 : i32
    %320 = tpu.dynamic_rotate %314 by %c2_i32_85 dim 1 : vector<24x128xf32>, i32 -> vector<24x128xf32>
    %c57 = arith.constant 57 : index
    %321 = memref.load %arg1[%c57] : memref<98xf32, #tpu.memory_space<smem>>
    %322 = vector.broadcast %321 : f32 to vector<24x128xf32>
    %323 = arith.mulf %320, %322 : vector<24x128xf32>
    %324 = arith.addf %303, %323 : vector<24x128xf32>
    %c1_i32_86 = arith.constant 1 : i32
    %325 = tpu.dynamic_rotate %314 by %c1_i32_86 dim 1 : vector<24x128xf32>, i32 -> vector<24x128xf32>
    %c58 = arith.constant 58 : index
    %326 = memref.load %arg1[%c58] : memref<98xf32, #tpu.memory_space<smem>>
    %327 = vector.broadcast %326 : f32 to vector<24x128xf32>
    %328 = arith.mulf %325, %327 : vector<24x128xf32>
    %329 = arith.addf %308, %328 : vector<24x128xf32>
    %c59 = arith.constant 59 : index
    %330 = memref.load %arg1[%c59] : memref<98xf32, #tpu.memory_space<smem>>
    %331 = vector.broadcast %330 : f32 to vector<24x128xf32>
    %332 = arith.mulf %314, %331 : vector<24x128xf32>
    %333 = arith.addf %313, %332 : vector<24x128xf32>
    %c127_i32_87 = arith.constant 127 : i32
    %334 = tpu.dynamic_rotate %314 by %c127_i32_87 dim 1 : vector<24x128xf32>, i32 -> vector<24x128xf32>
    %c60 = arith.constant 60 : index
    %335 = memref.load %arg1[%c60] : memref<98xf32, #tpu.memory_space<smem>>
    %336 = vector.broadcast %335 : f32 to vector<24x128xf32>
    %337 = arith.mulf %334, %336 : vector<24x128xf32>
    %338 = arith.addf %319, %337 : vector<24x128xf32>
    %c126_i32_88 = arith.constant 126 : i32
    %339 = tpu.dynamic_rotate %314 by %c126_i32_88 dim 1 : vector<24x128xf32>, i32 -> vector<24x128xf32>
    %c61 = arith.constant 61 : index
    %340 = memref.load %arg1[%c61] : memref<98xf32, #tpu.memory_space<smem>>
    %341 = vector.broadcast %340 : f32 to vector<24x128xf32>
    %342 = arith.mulf %339, %341 : vector<24x128xf32>
    %343 = arith.addf %324, %342 : vector<24x128xf32>
    %c125_i32_89 = arith.constant 125 : i32
    %344 = tpu.dynamic_rotate %314 by %c125_i32_89 dim 1 : vector<24x128xf32>, i32 -> vector<24x128xf32>
    %c62 = arith.constant 62 : index
    %345 = memref.load %arg1[%c62] : memref<98xf32, #tpu.memory_space<smem>>
    %346 = vector.broadcast %345 : f32 to vector<24x128xf32>
    %347 = arith.mulf %344, %346 : vector<24x128xf32>
    %348 = arith.addf %329, %347 : vector<24x128xf32>
    %c1_i32_90 = arith.constant 1 : i32
    %349 = tpu.dynamic_rotate %278 by %c1_i32_90 dim 0 : vector<24x128xf32>, i32 -> vector<24x128xf32>
    %c3_i32_91 = arith.constant 3 : i32
    %350 = tpu.dynamic_rotate %349 by %c3_i32_91 dim 1 : vector<24x128xf32>, i32 -> vector<24x128xf32>
    %c63 = arith.constant 63 : index
    %351 = memref.load %arg1[%c63] : memref<98xf32, #tpu.memory_space<smem>>
    %352 = vector.broadcast %351 : f32 to vector<24x128xf32>
    %353 = arith.mulf %350, %352 : vector<24x128xf32>
    %354 = arith.addf %333, %353 : vector<24x128xf32>
    %c2_i32_92 = arith.constant 2 : i32
    %355 = tpu.dynamic_rotate %349 by %c2_i32_92 dim 1 : vector<24x128xf32>, i32 -> vector<24x128xf32>
    %c64 = arith.constant 64 : index
    %356 = memref.load %arg1[%c64] : memref<98xf32, #tpu.memory_space<smem>>
    %357 = vector.broadcast %356 : f32 to vector<24x128xf32>
    %358 = arith.mulf %355, %357 : vector<24x128xf32>
    %359 = arith.addf %338, %358 : vector<24x128xf32>
    %c1_i32_93 = arith.constant 1 : i32
    %360 = tpu.dynamic_rotate %349 by %c1_i32_93 dim 1 : vector<24x128xf32>, i32 -> vector<24x128xf32>
    %c65 = arith.constant 65 : index
    %361 = memref.load %arg1[%c65] : memref<98xf32, #tpu.memory_space<smem>>
    %362 = vector.broadcast %361 : f32 to vector<24x128xf32>
    %363 = arith.mulf %360, %362 : vector<24x128xf32>
    %364 = arith.addf %343, %363 : vector<24x128xf32>
    %c66 = arith.constant 66 : index
    %365 = memref.load %arg1[%c66] : memref<98xf32, #tpu.memory_space<smem>>
    %366 = vector.broadcast %365 : f32 to vector<24x128xf32>
    %367 = arith.mulf %349, %366 : vector<24x128xf32>
    %368 = arith.addf %348, %367 : vector<24x128xf32>
    %c127_i32_94 = arith.constant 127 : i32
    %369 = tpu.dynamic_rotate %349 by %c127_i32_94 dim 1 : vector<24x128xf32>, i32 -> vector<24x128xf32>
    %c67 = arith.constant 67 : index
    %370 = memref.load %arg1[%c67] : memref<98xf32, #tpu.memory_space<smem>>
    %371 = vector.broadcast %370 : f32 to vector<24x128xf32>
    %372 = arith.mulf %369, %371 : vector<24x128xf32>
    %373 = arith.addf %354, %372 : vector<24x128xf32>
    %c126_i32_95 = arith.constant 126 : i32
    %374 = tpu.dynamic_rotate %349 by %c126_i32_95 dim 1 : vector<24x128xf32>, i32 -> vector<24x128xf32>
    %c68 = arith.constant 68 : index
    %375 = memref.load %arg1[%c68] : memref<98xf32, #tpu.memory_space<smem>>
    %376 = vector.broadcast %375 : f32 to vector<24x128xf32>
    %377 = arith.mulf %374, %376 : vector<24x128xf32>
    %378 = arith.addf %359, %377 : vector<24x128xf32>
    %c125_i32_96 = arith.constant 125 : i32
    %379 = tpu.dynamic_rotate %349 by %c125_i32_96 dim 1 : vector<24x128xf32>, i32 -> vector<24x128xf32>
    %c69 = arith.constant 69 : index
    %380 = memref.load %arg1[%c69] : memref<98xf32, #tpu.memory_space<smem>>
    %381 = vector.broadcast %380 : f32 to vector<24x128xf32>
    %382 = arith.mulf %379, %381 : vector<24x128xf32>
    %383 = arith.addf %364, %382 : vector<24x128xf32>
    %c3_i32_97 = arith.constant 3 : i32
    %384 = tpu.dynamic_rotate %278 by %c3_i32_97 dim 1 : vector<24x128xf32>, i32 -> vector<24x128xf32>
    %c70 = arith.constant 70 : index
    %385 = memref.load %arg1[%c70] : memref<98xf32, #tpu.memory_space<smem>>
    %386 = vector.broadcast %385 : f32 to vector<24x128xf32>
    %387 = arith.mulf %384, %386 : vector<24x128xf32>
    %388 = arith.addf %368, %387 : vector<24x128xf32>
    %c2_i32_98 = arith.constant 2 : i32
    %389 = tpu.dynamic_rotate %278 by %c2_i32_98 dim 1 : vector<24x128xf32>, i32 -> vector<24x128xf32>
    %c71 = arith.constant 71 : index
    %390 = memref.load %arg1[%c71] : memref<98xf32, #tpu.memory_space<smem>>
    %391 = vector.broadcast %390 : f32 to vector<24x128xf32>
    %392 = arith.mulf %389, %391 : vector<24x128xf32>
    %393 = arith.addf %373, %392 : vector<24x128xf32>
    %c1_i32_99 = arith.constant 1 : i32
    %394 = tpu.dynamic_rotate %278 by %c1_i32_99 dim 1 : vector<24x128xf32>, i32 -> vector<24x128xf32>
    %c72 = arith.constant 72 : index
    %395 = memref.load %arg1[%c72] : memref<98xf32, #tpu.memory_space<smem>>
    %396 = vector.broadcast %395 : f32 to vector<24x128xf32>
    %397 = arith.mulf %394, %396 : vector<24x128xf32>
    %398 = arith.addf %378, %397 : vector<24x128xf32>
    %c73 = arith.constant 73 : index
    %399 = memref.load %arg1[%c73] : memref<98xf32, #tpu.memory_space<smem>>
    %400 = vector.broadcast %399 : f32 to vector<24x128xf32>
    %401 = arith.mulf %278, %400 : vector<24x128xf32>
    %402 = arith.addf %383, %401 : vector<24x128xf32>
    %c127_i32_100 = arith.constant 127 : i32
    %403 = tpu.dynamic_rotate %278 by %c127_i32_100 dim 1 : vector<24x128xf32>, i32 -> vector<24x128xf32>
    %c74 = arith.constant 74 : index
    %404 = memref.load %arg1[%c74] : memref<98xf32, #tpu.memory_space<smem>>
    %405 = vector.broadcast %404 : f32 to vector<24x128xf32>
    %406 = arith.mulf %403, %405 : vector<24x128xf32>
    %407 = arith.addf %388, %406 : vector<24x128xf32>
    %c126_i32_101 = arith.constant 126 : i32
    %408 = tpu.dynamic_rotate %278 by %c126_i32_101 dim 1 : vector<24x128xf32>, i32 -> vector<24x128xf32>
    %c75 = arith.constant 75 : index
    %409 = memref.load %arg1[%c75] : memref<98xf32, #tpu.memory_space<smem>>
    %410 = vector.broadcast %409 : f32 to vector<24x128xf32>
    %411 = arith.mulf %408, %410 : vector<24x128xf32>
    %412 = arith.addf %393, %411 : vector<24x128xf32>
    %c125_i32_102 = arith.constant 125 : i32
    %413 = tpu.dynamic_rotate %278 by %c125_i32_102 dim 1 : vector<24x128xf32>, i32 -> vector<24x128xf32>
    %c76 = arith.constant 76 : index
    %414 = memref.load %arg1[%c76] : memref<98xf32, #tpu.memory_space<smem>>
    %415 = vector.broadcast %414 : f32 to vector<24x128xf32>
    %416 = arith.mulf %413, %415 : vector<24x128xf32>
    %417 = arith.addf %398, %416 : vector<24x128xf32>
    %c23_i32_103 = arith.constant 23 : i32
    %418 = tpu.dynamic_rotate %278 by %c23_i32_103 dim 0 : vector<24x128xf32>, i32 -> vector<24x128xf32>
    %c3_i32_104 = arith.constant 3 : i32
    %419 = tpu.dynamic_rotate %418 by %c3_i32_104 dim 1 : vector<24x128xf32>, i32 -> vector<24x128xf32>
    %c77 = arith.constant 77 : index
    %420 = memref.load %arg1[%c77] : memref<98xf32, #tpu.memory_space<smem>>
    %421 = vector.broadcast %420 : f32 to vector<24x128xf32>
    %422 = arith.mulf %419, %421 : vector<24x128xf32>
    %423 = arith.addf %402, %422 : vector<24x128xf32>
    %c2_i32_105 = arith.constant 2 : i32
    %424 = tpu.dynamic_rotate %418 by %c2_i32_105 dim 1 : vector<24x128xf32>, i32 -> vector<24x128xf32>
    %c78 = arith.constant 78 : index
    %425 = memref.load %arg1[%c78] : memref<98xf32, #tpu.memory_space<smem>>
    %426 = vector.broadcast %425 : f32 to vector<24x128xf32>
    %427 = arith.mulf %424, %426 : vector<24x128xf32>
    %428 = arith.addf %407, %427 : vector<24x128xf32>
    %c1_i32_106 = arith.constant 1 : i32
    %429 = tpu.dynamic_rotate %418 by %c1_i32_106 dim 1 : vector<24x128xf32>, i32 -> vector<24x128xf32>
    %c79 = arith.constant 79 : index
    %430 = memref.load %arg1[%c79] : memref<98xf32, #tpu.memory_space<smem>>
    %431 = vector.broadcast %430 : f32 to vector<24x128xf32>
    %432 = arith.mulf %429, %431 : vector<24x128xf32>
    %433 = arith.addf %412, %432 : vector<24x128xf32>
    %c80 = arith.constant 80 : index
    %434 = memref.load %arg1[%c80] : memref<98xf32, #tpu.memory_space<smem>>
    %435 = vector.broadcast %434 : f32 to vector<24x128xf32>
    %436 = arith.mulf %418, %435 : vector<24x128xf32>
    %437 = arith.addf %417, %436 : vector<24x128xf32>
    %c127_i32_107 = arith.constant 127 : i32
    %438 = tpu.dynamic_rotate %418 by %c127_i32_107 dim 1 : vector<24x128xf32>, i32 -> vector<24x128xf32>
    %c81 = arith.constant 81 : index
    %439 = memref.load %arg1[%c81] : memref<98xf32, #tpu.memory_space<smem>>
    %440 = vector.broadcast %439 : f32 to vector<24x128xf32>
    %441 = arith.mulf %438, %440 : vector<24x128xf32>
    %442 = arith.addf %423, %441 : vector<24x128xf32>
    %c126_i32_108 = arith.constant 126 : i32
    %443 = tpu.dynamic_rotate %418 by %c126_i32_108 dim 1 : vector<24x128xf32>, i32 -> vector<24x128xf32>
    %c82 = arith.constant 82 : index
    %444 = memref.load %arg1[%c82] : memref<98xf32, #tpu.memory_space<smem>>
    %445 = vector.broadcast %444 : f32 to vector<24x128xf32>
    %446 = arith.mulf %443, %445 : vector<24x128xf32>
    %447 = arith.addf %428, %446 : vector<24x128xf32>
    %c125_i32_109 = arith.constant 125 : i32
    %448 = tpu.dynamic_rotate %418 by %c125_i32_109 dim 1 : vector<24x128xf32>, i32 -> vector<24x128xf32>
    %c83 = arith.constant 83 : index
    %449 = memref.load %arg1[%c83] : memref<98xf32, #tpu.memory_space<smem>>
    %450 = vector.broadcast %449 : f32 to vector<24x128xf32>
    %451 = arith.mulf %448, %450 : vector<24x128xf32>
    %452 = arith.addf %433, %451 : vector<24x128xf32>
    %c22_i32_110 = arith.constant 22 : i32
    %453 = tpu.dynamic_rotate %278 by %c22_i32_110 dim 0 : vector<24x128xf32>, i32 -> vector<24x128xf32>
    %c3_i32_111 = arith.constant 3 : i32
    %454 = tpu.dynamic_rotate %453 by %c3_i32_111 dim 1 : vector<24x128xf32>, i32 -> vector<24x128xf32>
    %c84 = arith.constant 84 : index
    %455 = memref.load %arg1[%c84] : memref<98xf32, #tpu.memory_space<smem>>
    %456 = vector.broadcast %455 : f32 to vector<24x128xf32>
    %457 = arith.mulf %454, %456 : vector<24x128xf32>
    %458 = arith.addf %437, %457 : vector<24x128xf32>
    %c2_i32_112 = arith.constant 2 : i32
    %459 = tpu.dynamic_rotate %453 by %c2_i32_112 dim 1 : vector<24x128xf32>, i32 -> vector<24x128xf32>
    %c85 = arith.constant 85 : index
    %460 = memref.load %arg1[%c85] : memref<98xf32, #tpu.memory_space<smem>>
    %461 = vector.broadcast %460 : f32 to vector<24x128xf32>
    %462 = arith.mulf %459, %461 : vector<24x128xf32>
    %463 = arith.addf %442, %462 : vector<24x128xf32>
    %c1_i32_113 = arith.constant 1 : i32
    %464 = tpu.dynamic_rotate %453 by %c1_i32_113 dim 1 : vector<24x128xf32>, i32 -> vector<24x128xf32>
    %c86 = arith.constant 86 : index
    %465 = memref.load %arg1[%c86] : memref<98xf32, #tpu.memory_space<smem>>
    %466 = vector.broadcast %465 : f32 to vector<24x128xf32>
    %467 = arith.mulf %464, %466 : vector<24x128xf32>
    %468 = arith.addf %447, %467 : vector<24x128xf32>
    %c87 = arith.constant 87 : index
    %469 = memref.load %arg1[%c87] : memref<98xf32, #tpu.memory_space<smem>>
    %470 = vector.broadcast %469 : f32 to vector<24x128xf32>
    %471 = arith.mulf %453, %470 : vector<24x128xf32>
    %472 = arith.addf %452, %471 : vector<24x128xf32>
    %c127_i32_114 = arith.constant 127 : i32
    %473 = tpu.dynamic_rotate %453 by %c127_i32_114 dim 1 : vector<24x128xf32>, i32 -> vector<24x128xf32>
    %c88 = arith.constant 88 : index
    %474 = memref.load %arg1[%c88] : memref<98xf32, #tpu.memory_space<smem>>
    %475 = vector.broadcast %474 : f32 to vector<24x128xf32>
    %476 = arith.mulf %473, %475 : vector<24x128xf32>
    %477 = arith.addf %458, %476 : vector<24x128xf32>
    %c126_i32_115 = arith.constant 126 : i32
    %478 = tpu.dynamic_rotate %453 by %c126_i32_115 dim 1 : vector<24x128xf32>, i32 -> vector<24x128xf32>
    %c89 = arith.constant 89 : index
    %479 = memref.load %arg1[%c89] : memref<98xf32, #tpu.memory_space<smem>>
    %480 = vector.broadcast %479 : f32 to vector<24x128xf32>
    %481 = arith.mulf %478, %480 : vector<24x128xf32>
    %482 = arith.addf %463, %481 : vector<24x128xf32>
    %c125_i32_116 = arith.constant 125 : i32
    %483 = tpu.dynamic_rotate %453 by %c125_i32_116 dim 1 : vector<24x128xf32>, i32 -> vector<24x128xf32>
    %c90 = arith.constant 90 : index
    %484 = memref.load %arg1[%c90] : memref<98xf32, #tpu.memory_space<smem>>
    %485 = vector.broadcast %484 : f32 to vector<24x128xf32>
    %486 = arith.mulf %483, %485 : vector<24x128xf32>
    %487 = arith.addf %468, %486 : vector<24x128xf32>
    %c21_i32_117 = arith.constant 21 : i32
    %488 = tpu.dynamic_rotate %278 by %c21_i32_117 dim 0 : vector<24x128xf32>, i32 -> vector<24x128xf32>
    %c3_i32_118 = arith.constant 3 : i32
    %489 = tpu.dynamic_rotate %488 by %c3_i32_118 dim 1 : vector<24x128xf32>, i32 -> vector<24x128xf32>
    %c91 = arith.constant 91 : index
    %490 = memref.load %arg1[%c91] : memref<98xf32, #tpu.memory_space<smem>>
    %491 = vector.broadcast %490 : f32 to vector<24x128xf32>
    %492 = arith.mulf %489, %491 : vector<24x128xf32>
    %493 = arith.addf %472, %492 : vector<24x128xf32>
    %c2_i32_119 = arith.constant 2 : i32
    %494 = tpu.dynamic_rotate %488 by %c2_i32_119 dim 1 : vector<24x128xf32>, i32 -> vector<24x128xf32>
    %c92 = arith.constant 92 : index
    %495 = memref.load %arg1[%c92] : memref<98xf32, #tpu.memory_space<smem>>
    %496 = vector.broadcast %495 : f32 to vector<24x128xf32>
    %497 = arith.mulf %494, %496 : vector<24x128xf32>
    %498 = arith.addf %477, %497 : vector<24x128xf32>
    %c1_i32_120 = arith.constant 1 : i32
    %499 = tpu.dynamic_rotate %488 by %c1_i32_120 dim 1 : vector<24x128xf32>, i32 -> vector<24x128xf32>
    %c93 = arith.constant 93 : index
    %500 = memref.load %arg1[%c93] : memref<98xf32, #tpu.memory_space<smem>>
    %501 = vector.broadcast %500 : f32 to vector<24x128xf32>
    %502 = arith.mulf %499, %501 : vector<24x128xf32>
    %503 = arith.addf %482, %502 : vector<24x128xf32>
    %c94 = arith.constant 94 : index
    %504 = memref.load %arg1[%c94] : memref<98xf32, #tpu.memory_space<smem>>
    %505 = vector.broadcast %504 : f32 to vector<24x128xf32>
    %506 = arith.mulf %488, %505 : vector<24x128xf32>
    %507 = arith.addf %487, %506 : vector<24x128xf32>
    %c127_i32_121 = arith.constant 127 : i32
    %508 = tpu.dynamic_rotate %488 by %c127_i32_121 dim 1 : vector<24x128xf32>, i32 -> vector<24x128xf32>
    %c95 = arith.constant 95 : index
    %509 = memref.load %arg1[%c95] : memref<98xf32, #tpu.memory_space<smem>>
    %510 = vector.broadcast %509 : f32 to vector<24x128xf32>
    %511 = arith.mulf %508, %510 : vector<24x128xf32>
    %512 = arith.addf %493, %511 : vector<24x128xf32>
    %c126_i32_122 = arith.constant 126 : i32
    %513 = tpu.dynamic_rotate %488 by %c126_i32_122 dim 1 : vector<24x128xf32>, i32 -> vector<24x128xf32>
    %c96 = arith.constant 96 : index
    %514 = memref.load %arg1[%c96] : memref<98xf32, #tpu.memory_space<smem>>
    %515 = vector.broadcast %514 : f32 to vector<24x128xf32>
    %516 = arith.mulf %513, %515 : vector<24x128xf32>
    %517 = arith.addf %498, %516 : vector<24x128xf32>
    %c125_i32_123 = arith.constant 125 : i32
    %518 = tpu.dynamic_rotate %488 by %c125_i32_123 dim 1 : vector<24x128xf32>, i32 -> vector<24x128xf32>
    %c97 = arith.constant 97 : index
    %519 = memref.load %arg1[%c97] : memref<98xf32, #tpu.memory_space<smem>>
    %520 = vector.broadcast %519 : f32 to vector<24x128xf32>
    %521 = arith.mulf %518, %520 : vector<24x128xf32>
    %522 = arith.addf %503, %521 : vector<24x128xf32>
    %523 = arith.addf %517, %522 : vector<24x128xf32>
    %524 = arith.addf %507, %512 : vector<24x128xf32>
    %525 = arith.addf %523, %524 : vector<24x128xf32>
    %526 = vector.extract_strided_slice %525 {offsets = [0, 0], sizes = [16, 16], strides = [1, 1]} : vector<24x128xf32> to vector<16x16xf32>
    %527 = arith.negf %526 : vector<16x16xf32>
    %528 = math.exp %527 : vector<16x16xf32>
    %cst_124 = arith.constant 1.000000e+00 : f32
    %529 = vector.broadcast %cst_124 : f32 to vector<16x16xf32>
    %530 = arith.addf %529, %528 : vector<16x16xf32>
    %531 = arith.divf %529, %530 : vector<16x16xf32>
    %c0_i32 = arith.constant 0 : i32
    %c0_125 = arith.constant 0 : index
    %532 = arith.index_cast %c0_i32 : i32 to index
    %c0_126 = arith.constant 0 : index
    %c0_127 = arith.constant 0 : index
    %533 = vector.load %arg2[%c0_125, %532, %c0_126, %c0_127] : memref<1x4x16x16xf32, #tpu.memory_space<vmem>>, vector<1x1x16x16xf32>
    %534 = vector.shape_cast %533 : vector<1x1x16x16xf32> to vector<16x16xf32>
    %535 = arith.mulf %534, %531 : vector<16x16xf32>
    %c0_128 = arith.constant 0 : index
    %536 = arith.index_cast %c0_i32 : i32 to index
    %c0_129 = arith.constant 0 : index
    %c0_130 = arith.constant 0 : index
    %537 = vector.load %arg3[%c0_128, %536, %c0_129, %c0_130] : memref<1x4x16x16xf32, #tpu.memory_space<vmem>>, vector<1x1x16x16xf32>
    %538 = vector.shape_cast %537 : vector<1x1x16x16xf32> to vector<16x16xf32>
    %539 = vector.shape_cast %535 : vector<16x16xf32> to vector<1x1x16x16xf32>
    tpu.vector_store %arg3[%c0_128, %536, %c0_129, %c0_130], %539 {strides = array<i32>} : memref<1x4x16x16xf32, #tpu.memory_space<vmem>>, vector<1x1x16x16xf32>,
    %c1_i32_131 = arith.constant 1 : i32
    %c0_132 = arith.constant 0 : index
    %540 = arith.index_cast %c1_i32_131 : i32 to index
    %c0_133 = arith.constant 0 : index
    %c0_134 = arith.constant 0 : index
    %541 = vector.load %arg2[%c0_132, %540, %c0_133, %c0_134] : memref<1x4x16x16xf32, #tpu.memory_space<vmem>>, vector<1x1x16x16xf32>
    %542 = vector.shape_cast %541 : vector<1x1x16x16xf32> to vector<16x16xf32>
    %543 = arith.mulf %542, %531 : vector<16x16xf32>
    %c0_135 = arith.constant 0 : index
    %544 = arith.index_cast %c1_i32_131 : i32 to index
    %c0_136 = arith.constant 0 : index
    %c0_137 = arith.constant 0 : index
    %545 = vector.load %arg3[%c0_135, %544, %c0_136, %c0_137] : memref<1x4x16x16xf32, #tpu.memory_space<vmem>>, vector<1x1x16x16xf32>
    %546 = vector.shape_cast %545 : vector<1x1x16x16xf32> to vector<16x16xf32>
    %547 = vector.shape_cast %543 : vector<16x16xf32> to vector<1x1x16x16xf32>
    tpu.vector_store %arg3[%c0_135, %544, %c0_136, %c0_137], %547 {strides = array<i32>} : memref<1x4x16x16xf32, #tpu.memory_space<vmem>>, vector<1x1x16x16xf32>,
    %c2_i32_138 = arith.constant 2 : i32
    %c0_139 = arith.constant 0 : index
    %548 = arith.index_cast %c2_i32_138 : i32 to index
    %c0_140 = arith.constant 0 : index
    %c0_141 = arith.constant 0 : index
    %549 = vector.load %arg2[%c0_139, %548, %c0_140, %c0_141] : memref<1x4x16x16xf32, #tpu.memory_space<vmem>>, vector<1x1x16x16xf32>
    %550 = vector.shape_cast %549 : vector<1x1x16x16xf32> to vector<16x16xf32>
    %551 = arith.mulf %550, %531 : vector<16x16xf32>
    %c0_142 = arith.constant 0 : index
    %552 = arith.index_cast %c2_i32_138 : i32 to index
    %c0_143 = arith.constant 0 : index
    %c0_144 = arith.constant 0 : index
    %553 = vector.load %arg3[%c0_142, %552, %c0_143, %c0_144] : memref<1x4x16x16xf32, #tpu.memory_space<vmem>>, vector<1x1x16x16xf32>
    %554 = vector.shape_cast %553 : vector<1x1x16x16xf32> to vector<16x16xf32>
    %555 = vector.shape_cast %551 : vector<16x16xf32> to vector<1x1x16x16xf32>
    tpu.vector_store %arg3[%c0_142, %552, %c0_143, %c0_144], %555 {strides = array<i32>} : memref<1x4x16x16xf32, #tpu.memory_space<vmem>>, vector<1x1x16x16xf32>,
    %c3_i32_145 = arith.constant 3 : i32
    %c0_146 = arith.constant 0 : index
    %556 = arith.index_cast %c3_i32_145 : i32 to index
    %c0_147 = arith.constant 0 : index
    %c0_148 = arith.constant 0 : index
    %557 = vector.load %arg2[%c0_146, %556, %c0_147, %c0_148] : memref<1x4x16x16xf32, #tpu.memory_space<vmem>>, vector<1x1x16x16xf32>
    %558 = vector.shape_cast %557 : vector<1x1x16x16xf32> to vector<16x16xf32>
    %559 = arith.mulf %558, %531 : vector<16x16xf32>
    %c0_149 = arith.constant 0 : index
    %560 = arith.index_cast %c3_i32_145 : i32 to index
    %c0_150 = arith.constant 0 : index
    %c0_151 = arith.constant 0 : index
    %561 = vector.load %arg3[%c0_149, %560, %c0_150, %c0_151] : memref<1x4x16x16xf32, #tpu.memory_space<vmem>>, vector<1x1x16x16xf32>
    %562 = vector.shape_cast %561 : vector<1x1x16x16xf32> to vector<16x16xf32>
    %563 = vector.shape_cast %559 : vector<16x16xf32> to vector<1x1x16x16xf32>
    tpu.vector_store %arg3[%c0_149, %560, %c0_150, %c0_151], %563 {strides = array<i32>} : memref<1x4x16x16xf32, #tpu.memory_space<vmem>>, vector<1x1x16x16xf32>,
    %c4_i32 = arith.constant 4 : i32
    return
  }
  func.func @transform_0(%arg0: i32) -> i32 {
    %c0_i32 = arith.constant 0 : i32
    %c0_i32_0 = arith.constant 0 : i32
    return %c0_i32 : i32
  }
  func.func @transform_1(%arg0: i32) -> (i32, i32, i32, i32) {
    %c0_i32 = arith.constant 0 : i32
    %c0_i32_0 = arith.constant 0 : i32
    %c0_i32_1 = arith.constant 0 : i32
    %c0_i32_2 = arith.constant 0 : i32
    return %arg0, %c0_i32, %c0_i32_0, %c0_i32_1 : i32, i32, i32, i32
  }
  func.func @transform_2(%arg0: i32) -> (i32, i32, i32, i32) {
    %c0_i32 = arith.constant 0 : i32
    %c0_i32_0 = arith.constant 0 : i32
    %c0_i32_1 = arith.constant 0 : i32
    %c0_i32_2 = arith.constant 0 : i32
    return %arg0, %c0_i32, %c0_i32_0, %c0_i32_1 : i32, i32, i32, i32
  }
}

</mosaic_0001>

<llo_original>
// kernel: tpu_custom_call.1
$region0: #{tpu_custom_call.1}
  #allocation0 [shape = 'u32[]', space=smem, size = 0x4, offset = 0x4, fixed_abs, tag = 'smem constant byte address 0x4 - core index']
  #allocation1 [shape = 'u32[144,128]{1,0:T(1,128)}', space=vmem, size = 0x12000, scoped, tag = 'internal scratch']
  #allocation2 [shape = 'f32[2,24,128]{2,1,0:T(8,128)}', space=vmem, size = 0x6000, scoped, tag = 'scratch operand']
  %s0 = inlined_call_operand.hbm [shape: f32[98], index: 0, kind: input, shape index: {}]
  %s1 = inlined_call_operand.hbm [shape: f32[2,4,16,16], index: 1, kind: input, shape index: {}]
  %s2 = inlined_call_operand.hbm [shape: f32[2,4,16,16], index: 2, kind: output, shape index: {}]
  %s3 = sld [smem:[#allocation0]]
  $region49: #{tpu_custom_call.1} parent=0
    _
  %s5 = ssub.s32 1, %s3
  %s6 = scalar_select 0, %s5, %s3
  $region1: #{tpu_custom_call.1} parent=0
    #allocation3 [shape = 'u8[512]{0}', space=smem, size = 0x200, scoped, tag = 'input window, operand 0, single buffered']
    #allocation4 [shape = 's32[2]{0}', space=sflag, size = 0x8, scoped, tag = 'scoped memory for tpu_custom_call.1']
    #allocation5 [shape = 's32[2]{0}', space=sflag, size = 0x8, scoped, tag = 'scoped memory for tpu_custom_call.1']
    #allocation6 [shape = 's32[2]{0}', space=sflag, size = 0x8, scoped, tag = 'scoped memory for tpu_custom_call.1']
    #allocation7 [shape = 'u8[65536]{0}', space=vmem, size = 0x10000, scoped, tag = 'input window, operand 1']
    #allocation8 [shape = 'u8[65536]{0}', space=vmem, size = 0x10000, scoped, tag = 'output window, operand 0']
    %7 = vsyncpa [#allocation6], 0
    %8 = vsyncpa [#allocation4], 0
    %s9 = scalar_lea.sflag [#allocation4], 1
    %10 = vsyncpa %s9, 0
    %11 = vsyncpa [#allocation5], 0
    %s12 = scalar_lea.sflag [#allocation5], 1
    %13 = vsyncpa %s12, 0
    loop: start=0, step=1, limit=4
    $region2: #{tpu_custom_call.1} parent=1 // loop_pre_header
      _
    $region3: #{tpu_custom_call.1} parent=1 // loop_header
      %s15 = sphi 0, %s19
      %p16 = scmp.ge.s32.totalorder %s15, 4
      %s23 = sphi 0, %s23
      %s25 = sphi 0, %s23
      %s26 = sphi 0, %s25
      %s40 = sphi 0, %s26
      %s46 = sphi 0, %s48
      %s49 = sphi 0, %s46
      %s50 = sphi 0, %s49
      %s66 = sphi 0, %s50
      %s72 = sphi 0, %s74
      %s75 = sphi 0, %s72
      %s76 = sphi 0, %s75
      %s92 = sphi 0, %s76
    $region4: #{tpu_custom_call.1} parent=1 // loop_header_branch
      %18 = sbr.rel (%p16) target = $region8
    $region5: #{tpu_custom_call.1} parent=1 // loop_body
      %s20 = ssub.s32 %s15, 1
      %s21 = ssub.s32 %s15, 2
      %s22 = sadd.s32 %s15, 1
      %s24 = sadd.s32 %s23, 1
      %p27 = scmp.eq.s32.totalorder %s15, 1
      %p28 = scmp.ne.s32.totalorder %s23, %s25
      %p29 = scmp.eq.s32.totalorder %s15, 0
      %p30 = por %p28, %p29
      %p31 = scmp.ne.s32.totalorder %s23, %s25
      %p32 = scmp.eq.s32.totalorder %s20, 1
      %p33 = por %p31, %p32
      %p34 = scmp.ne.s32.totalorder %s25, %s26
      %p35 = scmp.eq.s32.totalorder %s20, 0
      %p36 = por %p34, %p35
      %p37 = scmp.ne.s32.totalorder %s25, %s26
      %p38 = scmp.eq.s32.totalorder %s21, 1
      %p39 = por %p37, %p38
      %p41 = scmp.ne.s32.totalorder %s26, %s40
      %p42 = scmp.eq.s32.totalorder %s21, 0
      %p43 = por %p41, %p42
      %s44 = ssub.s32 %s15, %s22
      %p45 = scmp.eq.s32.totalorder %s44, 0
      %s47 = sadd.s32 %s46, 1
      %s48 = scalar_select %p45, %s46, %s47
      %p51 = pneg %p45
      %p52 = scmp.eq.s32.totalorder %s15, 1
      %p53 = por %p51, %p52
      %p54 = scmp.ne.s32.totalorder %s46, %s49
      %p55 = scmp.eq.s32.totalorder %s15, 0
      %p56 = por %p54, %p55
      %p57 = scmp.ne.s32.totalorder %s46, %s49
      %p58 = scmp.eq.s32.totalorder %s20, 1
      %p59 = por %p57, %p58
      %p60 = scmp.ne.s32.totalorder %s49, %s50
      %p61 = scmp.eq.s32.totalorder %s20, 0
      %p62 = por %p60, %p61
      %p63 = scmp.ne.s32.totalorder %s49, %s50
      %p64 = scmp.eq.s32.totalorder %s21, 1
      %p65 = por %p63, %p64
      %p67 = scmp.ne.s32.totalorder %s50, %s66
      %p68 = scmp.eq.s32.totalorder %s21, 0
      %p69 = por %p67, %p68
      %s70 = ssub.s32 %s15, %s22
      %p71 = scmp.eq.s32.totalorder %s70, 0
      %s73 = sadd.s32 %s72, 1
      %s74 = scalar_select %p71, %s72, %s73
      %p77 = pneg %p71
      %p78 = scmp.eq.s32.totalorder %s15, 1
      %p79 = por %p77, %p78
      %p80 = scmp.ne.s32.totalorder %s72, %s75
      %p81 = scmp.eq.s32.totalorder %s15, 0
      %p82 = por %p80, %p81
      %p83 = scmp.ne.s32.totalorder %s72, %s75
      %p84 = scmp.eq.s32.totalorder %s20, 1
      %p85 = por %p83, %p84
      %p86 = scmp.ne.s32.totalorder %s75, %s76
      %p87 = scmp.eq.s32.totalorder %s20, 0
      %p88 = por %p86, %p87
      %p89 = scmp.ne.s32.totalorder %s75, %s76
      %p90 = scmp.eq.s32.totalorder %s21, 1
      %p91 = por %p89, %p90
      %p93 = scmp.ne.s32.totalorder %s76, %s92
      %p94 = scmp.eq.s32.totalorder %s21, 0
      %p95 = por %p93, %p94
      %p96 = scmp.le.s32.totalorder 1, %s15
      %p97 = scmp.lt.s32.totalorder %s15, 3
      %p98 = pnand %p96, %p97
      %p99 = pneg %p98
      // Predicated region
      $region9: #{tpu_custom_call.1} parent=5 // pred_check
        _
      $region10: #{tpu_custom_call.1} parent=5 // pred_check_branch
        %101 = sbr.rel (%p98) target = $region12
      $region11: #{tpu_custom_call.1} parent=5 // pred_region
        %s102 = ssub.s32 %s15, 1
        // Predicated region
        $region13: #{tpu_custom_call.1} parent=11 // pred_check
          %p103 = pneg %p36
        $region14: #{tpu_custom_call.1} parent=11 // pred_check_branch
          %105 = sbr.rel (%p103) target = $region16
        $region15: #{tpu_custom_call.1} parent=11 // pred_region
          %s107 = ssub.s32 16, 16
          %108 = vsyncadd [#allocation6], %s107
          %111 = dma.hbm_to_smem %s0, 16, [#allocation3], [#allocation6]
        $region16: #{tpu_custom_call.1} parent=11 // pred_fallthru
          _
      $region12: #{tpu_custom_call.1} parent=5 // pred_fallthru
        _
      %p112 = scmp.lt.s32.totalorder %s15, 2
      // Predicated region
      $region17: #{tpu_custom_call.1} parent=5 // pred_check
        %p113 = pneg %p112
      $region18: #{tpu_custom_call.1} parent=5 // pred_check_branch
        %115 = sbr.rel (%p113) target = $region20
      $region19: #{tpu_custom_call.1} parent=5 // pred_region
        // Predicated region
        $region21: #{tpu_custom_call.1} parent=19 // pred_check
          %p116 = pneg %p56
        $region22: #{tpu_custom_call.1} parent=19 // pred_check_branch
          %118 = sbr.rel (%p116) target = $region24
        $region23: #{tpu_custom_call.1} parent=19 // pred_region
          %s119 = sand.u32 %s46, 1
          %s120 = scalar_lea.sflag [#allocation4], %s119
          %s121 = sand.u32 %s46, 1
          %s122 = smul.addr %s121, 64
          %s123 = scalar_lea.vmem [#allocation7], %s122
          %s125 = ssub.s32 1024, 1024
          %126 = vsyncadd %s120, %s125
          %s127 = smul.addr %s15, 8
          %s128 = smul.addr %s127, 128
          %s129 = scalar_lea.hbm %s1, %s128
          %s130 = sshll.u32 %s123, 4
          %s131 = int_to_ptr.vmem [resolvable:$true] %s130
          %136 = dma.hbm_to_vmem [thread:$0]  %s129, 1024, %s131, %s120, 128, 128, 8
        $region24: #{tpu_custom_call.1} parent=19 // pred_fallthru
          _
      $region20: #{tpu_custom_call.1} parent=5 // pred_fallthru
        _
      %p137 = scmp.le.s32.totalorder 1, %s15
      %p138 = scmp.lt.s32.totalorder %s15, 3
      %p139 = pnand %p137, %p138
      %p140 = pneg %p139
      // Predicated region
      $region25: #{tpu_custom_call.1} parent=5 // pred_check
        _
      $region26: #{tpu_custom_call.1} parent=5 // pred_check_branch
        %142 = sbr.rel (%p139) target = $region28
      $region27: #{tpu_custom_call.1} parent=5 // pred_region
        %s143 = ssub.s32 %s15, 1
        // Predicated region
        $region29: #{tpu_custom_call.1} parent=27 // pred_check
          %p144 = pneg %p36
        $region30: #{tpu_custom_call.1} parent=27 // pred_check_branch
          %146 = sbr.rel (%p144) target = $region32
        $region31: #{tpu_custom_call.1} parent=27 // pred_region
          %147 = dma.done [#allocation6], 16
        $region32: #{tpu_custom_call.1} parent=27 // pred_fallthru
          _
        %s148 = sand.u32 %s49, 1
        %s149 = scalar_lea.sflag [#allocation4], %s148
        %s150 = sand.u32 %s49, 1
        %s151 = smul.addr %s150, 64
        %s152 = scalar_lea.vmem [#allocation7], %s151
        // Predicated region
        $region33: #{tpu_custom_call.1} parent=27 // pred_check
          %p153 = pneg %p62
        $region34: #{tpu_custom_call.1} parent=27 // pred_check_branch
          %155 = sbr.rel (%p153) target = $region36
        $region35: #{tpu_custom_call.1} parent=27 // pred_region
          %156 = dma.done %s149, 1024
        $region36: #{tpu_custom_call.1} parent=27 // pred_fallthru
          _
        %157 = sfence
        %p158 = pneg %p36
        %p159 = pneg %p33
        %s160 = sand.u32 %s49, 1
        %s161 = scalar_lea.sflag [#allocation4], %s160
        %s162 = sand.u32 %s49, 1
        %s163 = smul.addr %s162, 64
        %s164 = scalar_lea.vmem [#allocation7], %s163
        %p165 = pneg %p62
        %p166 = pneg %p59
        %p167 = pneg %p88
        %p168 = pneg %p85
        %s169 = sand.u32 %s75, 1
        %s170 = scalar_lea.sflag [#allocation5], %s169
        %s171 = sand.u32 %s75, 1
        %s172 = smul.addr %s171, 64
        %s173 = scalar_lea.vmem [#allocation8], %s172
        %v174 = vld [vmem:[%s152] sm:$0xff]
        %v175 = vld [vmem:[%s152 + $0x8] sm:$0xff]
        %s176 = scalar_lea.vmem %s152, 16 [#allocation7]
        %v177 = vld [vmem:[%s176] sm:$0xff]
        %v178 = vld [vmem:[%s176 + $0x8] sm:$0xff]
        %v179 = vmax.f32 %v174, %v177
        %v180 = vmax.f32 %v175, %v178
        %v181 = vadd.f32 %v174, %v177
        %v182 = vadd.f32 %v175, %v178
        %s183 = scalar_lea.vmem %s152, 32 [#allocation7]
        %v184 = vld [vmem:[%s183] sm:$0xff]
        %v185 = vld [vmem:[%s183 + $0x8] sm:$0xff]
        %v186 = vmax.f32 %v179, %v184
        %v187 = vmax.f32 %v180, %v185
        %v188 = vadd.f32 %v181, %v184
        %v189 = vadd.f32 %v182, %v185
        %s190 = scalar_lea.vmem %s152, 48 [#allocation7]
        %v191 = vld [vmem:[%s190] sm:$0xff]
        %v192 = vld [vmem:[%s190 + $0x8] sm:$0xff]
        %v193 = vmax.f32 %v186, %v191
        %v194 = vmax.f32 %v187, %v192
        %v195 = vadd.f32 %v188, %v191
        %v196 = vadd.f32 %v189, %v192
        %v197 = vmul.f32 %v195, 0.25
        %v198 = vmul.f32 %v196, 0.25
        %199 = vst [vmem:[#allocation2] sm:$0xff] 0.0
        %200 = vst [vmem:[#allocation2 + $0x8] sm:$0xff] 0.0
        %201 = vst [vmem:[#allocation2 + $0x10] sm:$0xff] 0.0
        %202 = vst [vmem:[#allocation2 + $0x18] sm:$0xff] 0.0
        %203 = vst [vmem:[#allocation2 + $0x20] sm:$0xff] 0.0
        %204 = vst [vmem:[#allocation2 + $0x28] sm:$0xff] 0.0
        %vm205 = vcmask 130048
        %206 = vst.msk [vmem:[#allocation2] sm:$0xff] %vm205, %v193
        %207 = vst.msk [vmem:[#allocation2 + $0x8] sm:$0xff] %vm205, %v194
        %s208 = scalar_lea.vmem [#allocation2], 24
        %209 = vst.msk [vmem:[%s208] sm:$0xff] %vm205, %v197
        %210 = vst.msk [vmem:[%s208 + $0x8] sm:$0xff] %vm205, %v198
        %v211 = vld [vmem:[#allocation2] sm:$0xff]
        %v212 = vld [vmem:[#allocation2 + $0x8] sm:$0xff]
        %v213 = vld [vmem:[#allocation2 + $0x10] sm:$0xff]
        %v214 = vrot.slane %v211, 5
        %v215 = vrot.slane %v212, 5
        %v216 = vrot.slane %v213, 5
        %v217 = vlaneseq
        %v218 = vshrl.u32 %v217, 7
        %vm219 = vcmp.lt.s32.totalorder %v218, 3
        %v220 = vsel %vm219, %v214, %v215
        %v221 = vsel %vm219, %v216, %v214
        %222 = vrot.lane.b32.xlu0 %v221, 3
        %v223 = vpop.permute.xlu0 %222
        %224 = vrot.lane.b32.xlu0 %v220, 3
        %v225 = vpop.permute.xlu0 %224
        %s226 = sld [smem:[#allocation3]]
        %v227 = vstv %s226
        %v228 = vmul.f32 %v223, %v227
        %v229 = vmul.f32 %v225, %v227
        %v230 = vadd.f32 %v228, 0.0
        %v231 = vadd.f32 %v229, 0.0
        %232 = vrot.lane.b32.xlu0 %v221, 2
        %v233 = vpop.permute.xlu0 %232
        %234 = vrot.lane.b32.xlu0 %v220, 2
        %v235 = vpop.permute.xlu0 %234
        %s236 = sld [smem:[#allocation3 + $0x1]]
        %v237 = vstv %s236
        %v238 = vmul.f32 %v233, %v237
        %v239 = vmul.f32 %v235, %v237
        %v240 = vadd.f32 %v238, 0.0
        %v241 = vadd.f32 %v239, 0.0
        %242 = vrot.lane.b32.xlu0 %v221, 1
        %v243 = vpop.permute.xlu0 %242
        %244 = vrot.lane.b32.xlu0 %v220, 1
        %v245 = vpop.permute.xlu0 %244
        %s246 = sld [smem:[#allocation3 + $0x2]]
        %v247 = vstv %s246
        %v248 = vmul.f32 %v243, %v247
        %v249 = vmul.f32 %v245, %v247
        %v250 = vadd.f32 %v248, 0.0
        %v251 = vadd.f32 %v249, 0.0
        %s252 = sld [smem:[#allocation3 + $0x3]]
        %v253 = vstv %s252
        %v254 = vmul.f32 %v221, %v253
        %v255 = vmul.f32 %v220, %v253
        %v256 = vadd.f32 %v254, 0.0
        %v257 = vadd.f32 %v255, 0.0
        %258 = vrot.lane.b32.xlu0 %v221, 127
        %v259 = vpop.permute.xlu0 %258
        %260 = vrot.lane.b32.xlu0 %v220, 127
        %v261 = vpop.permute.xlu0 %260
        %s262 = sld [smem:[#allocation3 + $0x4]]
        %v263 = vstv %s262
        %v264 = vmul.f32 %v259, %v263
        %v265 = vmul.f32 %v261, %v263
        %v266 = vadd.f32 %v230, %v264
        %v267 = vadd.f32 %v231, %v265
        %268 = vrot.lane.b32.xlu0 %v221, 126
        %v269 = vpop.permute.xlu0 %268
        %270 = vrot.lane.b32.xlu0 %v220, 126
        %v271 = vpop.permute.xlu0 %270
        %s272 = sld [smem:[#allocation3 + $0x5]]
        %v273 = vstv %s272
        %v274 = vmul.f32 %v269, %v273
        %v275 = vmul.f32 %v271, %v273
        %v276 = vadd.f32 %v240, %v274
        %v277 = vadd.f32 %v241, %v275
        %278 = vrot.lane.b32.xlu0 %v221, 125
        %v279 = vpop.permute.xlu0 %278
        %280 = vrot.lane.b32.xlu0 %v220, 125
        %v281 = vpop.permute.xlu0 %280
        %s282 = sld [smem:[#allocation3 + $0x6]]
        %v283 = vstv %s282
        %v284 = vmul.f32 %v279, %v283
        %v285 = vmul.f32 %v281, %v283
        %v286 = vadd.f32 %v250, %v284
        %v287 = vadd.f32 %v251, %v285
        %v288 = vrot.slane %v211, 6
        %v289 = vrot.slane %v212, 6
        %v290 = vrot.slane %v213, 6
        %vm291 = vcmp.lt.s32.totalorder %v218, 2
        %v292 = vsel %vm291, %v288, %v289
        %v293 = vsel %vm291, %v290, %v288
        %294 = vrot.lane.b32.xlu0 %v293, 3
        %v295 = vpop.permute.xlu0 %294
        %296 = vrot.lane.b32.xlu0 %v292, 3
        %v297 = vpop.permute.xlu0 %296
        %s298 = sld [smem:[#allocation3 + $0x7]]
        %v299 = vstv %s298
        %v300 = vmul.f32 %v295, %v299
        %v301 = vmul.f32 %v297, %v299
        %v302 = vadd.f32 %v256, %v300
        %v303 = vadd.f32 %v257, %v301
        %304 = vrot.lane.b32.xlu0 %v293, 2
        %v305 = vpop.permute.xlu0 %304
        %306 = vrot.lane.b32.xlu0 %v292, 2
        %v307 = vpop.permute.xlu0 %306
        %s308 = sld [smem:[#allocation3 + $0x8]]
        %v309 = vstv %s308
        %v310 = vmul.f32 %v305, %v309
        %v311 = vmul.f32 %v307, %v309
        %v312 = vadd.f32 %v266, %v310
        %v313 = vadd.f32 %v267, %v311
        %314 = vrot.lane.b32.xlu0 %v293, 1
        %v315 = vpop.permute.xlu0 %314
        %316 = vrot.lane.b32.xlu0 %v292, 1
        %v317 = vpop.permute.xlu0 %316
        %s318 = sld [smem:[#allocation3 + $0x9]]
        %v319 = vstv %s318
        %v320 = vmul.f32 %v315, %v319
        %v321 = vmul.f32 %v317, %v319
        %v322 = vadd.f32 %v276, %v320
        %v323 = vadd.f32 %v277, %v321
        %s324 = sld [smem:[#allocation3 + $0xa]]
        %v325 = vstv %s324
        %v326 = vmul.f32 %v293, %v325
        %v327 = vmul.f32 %v292, %v325
        %v328 = vadd.f32 %v286, %v326
        %v329 = vadd.f32 %v287, %v327
        %330 = vrot.lane.b32.xlu0 %v293, 127
        %v331 = vpop.permute.xlu0 %330
        %332 = vrot.lane.b32.xlu0 %v292, 127
        %v333 = vpop.permute.xlu0 %332
        %s334 = sld [smem:[#allocation3 + $0xb]]
        %v335 = vstv %s334
        %v336 = vmul.f32 %v331, %v335
        %v337 = vmul.f32 %v333, %v335
        %v338 = vadd.f32 %v302, %v336
        %v339 = vadd.f32 %v303, %v337
        %340 = vrot.lane.b32.xlu0 %v293, 126
        %v341 = vpop.permute.xlu0 %340
        %342 = vrot.lane.b32.xlu0 %v292, 126
        %v343 = vpop.permute.xlu0 %342
        %s344 = sld [smem:[#allocation3 + $0xc]]
        %v345 = vstv %s344
        %v346 = vmul.f32 %v341, %v345
        %v347 = vmul.f32 %v343, %v345
        %v348 = vadd.f32 %v312, %v346
        %v349 = vadd.f32 %v313, %v347
        %350 = vrot.lane.b32.xlu0 %v293, 125
        %v351 = vpop.permute.xlu0 %350
        %352 = vrot.lane.b32.xlu0 %v292, 125
        %v353 = vpop.permute.xlu0 %352
        %s354 = sld [smem:[#allocation3 + $0xd]]
        %v355 = vstv %s354
        %v356 = vmul.f32 %v351, %v355
        %v357 = vmul.f32 %v353, %v355
        %v358 = vadd.f32 %v322, %v356
        %v359 = vadd.f32 %v323, %v357
        %v360 = vrot.slane %v211, 7
        %v361 = vrot.slane %v212, 7
        %v362 = vrot.slane %v213, 7
        %vm363 = vcmp.lt.s32.totalorder %v218, 1
        %v364 = vsel %vm363, %v360, %v361
        %v365 = vsel %vm363, %v362, %v360
        %366 = vrot.lane.b32.xlu0 %v365, 3
        %v367 = vpop.permute.xlu0 %366
        %368 = vrot.lane.b32.xlu0 %v364, 3
        %v369 = vpop.permute.xlu0 %368
        %s370 = sld [smem:[#allocation3 + $0xe]]
        %v371 = vstv %s370
        %v372 = vmul.f32 %v367, %v371
        %v373 = vmul.f32 %v369, %v371
        %v374 = vadd.f32 %v328, %v372
        %v375 = vadd.f32 %v329, %v373
        %376 = vrot.lane.b32.xlu0 %v365, 2
        %v377 = vpop.permute.xlu0 %376
        %378 = vrot.lane.b32.xlu0 %v364, 2
        %v379 = vpop.permute.xlu0 %378
        %s380 = sld [smem:[#allocation3 + $0xf]]
        %v381 = vstv %s380
        %v382 = vmul.f32 %v377, %v381
        %v383 = vmul.f32 %v379, %v381
        %v384 = vadd.f32 %v338, %v382
        %v385 = vadd.f32 %v339, %v383
        %386 = vrot.lane.b32.xlu0 %v365, 1
        %v387 = vpop.permute.xlu0 %386
        %388 = vrot.lane.b32.xlu0 %v364, 1
        %v389 = vpop.permute.xlu0 %388
        %s390 = sld [smem:[#allocation3 + $0x10]]
        %v391 = vstv %s390
        %v392 = vmul.f32 %v387, %v391
        %v393 = vmul.f32 %v389, %v391
        %v394 = vadd.f32 %v348, %v392
        %v395 = vadd.f32 %v349, %v393
        %s396 = sld [smem:[#allocation3 + $0x11]]
        %v397 = vstv %s396
        %v398 = vmul.f32 %v365, %v397
        %v399 = vmul.f32 %v364, %v397
        %v400 = vadd.f32 %v358, %v398
        %v401 = vadd.f32 %v359, %v399
        %402 = vrot.lane.b32.xlu0 %v365, 127
        %v403 = vpop.permute.xlu0 %402
        %404 = vrot.lane.b32.xlu0 %v364, 127
        %v405 = vpop.permute.xlu0 %404
        %s406 = sld [smem:[#allocation3 + $0x12]]
        %v407 = vstv %s406
        %v408 = vmul.f32 %v403, %v407
        %v409 = vmul.f32 %v405, %v407
        %v410 = vadd.f32 %v374, %v408
        %v411 = vadd.f32 %v375, %v409
        %412 = vrot.lane.b32.xlu0 %v365, 126
        %v413 = vpop.permute.xlu0 %412
        %414 = vrot.lane.b32.xlu0 %v364, 126
        %v415 = vpop.permute.xlu0 %414
        %s416 = sld [smem:[#allocation3 + $0x13]]
        %v417 = vstv %s416
        %v418 = vmul.f32 %v413, %v417
        %v419 = vmul.f32 %v415, %v417
        %v420 = vadd.f32 %v384, %v418
        %v421 = vadd.f32 %v385, %v419
        %422 = vrot.lane.b32.xlu0 %v365, 125
        %v423 = vpop.permute.xlu0 %422
        %424 = vrot.lane.b32.xlu0 %v364, 125
        %v425 = vpop.permute.xlu0 %424
        %s426 = sld [smem:[#allocation3 + $0x14]]
        %v427 = vstv %s426
        %v428 = vmul.f32 %v423, %v427
        %v429 = vmul.f32 %v425, %v427
        %v430 = vadd.f32 %v394, %v428
        %v431 = vadd.f32 %v395, %v429
        %432 = vrot.lane.b32.xlu0 %v211, 3
        %v433 = vpop.permute.xlu0 %432
        %434 = vrot.lane.b32.xlu0 %v212, 3
        %v435 = vpop.permute.xlu0 %434
        %s436 = sld [smem:[#allocation3 + $0x15]]
        %v437 = vstv %s436
        %v438 = vmul.f32 %v433, %v437
        %v439 = vmul.f32 %v435, %v437
        %v440 = vadd.f32 %v400, %v438
        %v441 = vadd.f32 %v401, %v439
        %442 = vrot.lane.b32.xlu0 %v211, 2
        %v443 = vpop.permute.xlu0 %442
        %444 = vrot.lane.b32.xlu0 %v212, 2
        %v445 = vpop.permute.xlu0 %444
        %s446 = sld [smem:[#allocation3 + $0x16]]
        %v447 = vstv %s446
        %v448 = vmul.f32 %v443, %v447
        %v449 = vmul.f32 %v445, %v447
        %v450 = vadd.f32 %v410, %v448
        %v451 = vadd.f32 %v411, %v449
        %452 = vrot.lane.b32.xlu0 %v211, 1
        %v453 = vpop.permute.xlu0 %452
        %454 = vrot.lane.b32.xlu0 %v212, 1
        %v455 = vpop.permute.xlu0 %454
        %s456 = sld [smem:[#allocation3 + $0x17]]
        %v457 = vstv %s456
        %v458 = vmul.f32 %v453, %v457
        %v459 = vmul.f32 %v455, %v457
        %v460 = vadd.f32 %v420, %v458
        %v461 = vadd.f32 %v421, %v459
        %s462 = sld [smem:[#allocation3 + $0x18]]
        %v463 = vstv %s462
        %v464 = vmul.f32 %v211, %v463
        %v465 = vmul.f32 %v212, %v463
        %v466 = vadd.f32 %v430, %v464
        %v467 = vadd.f32 %v431, %v465
        %468 = vrot.lane.b32.xlu0 %v211, 127
        %v469 = vpop.permute.xlu0 %468
        %470 = vrot.lane.b32.xlu0 %v212, 127
        %v471 = vpop.permute.xlu0 %470
        %s472 = sld [smem:[#allocation3 + $0x19]]
        %v473 = vstv %s472
        %v474 = vmul.f32 %v469, %v473
        %v475 = vmul.f32 %v471, %v473
        %v476 = vadd.f32 %v440, %v474
        %v477 = vadd.f32 %v441, %v475
        %478 = vrot.lane.b32.xlu0 %v211, 126
        %v479 = vpop.permute.xlu0 %478
        %480 = vrot.lane.b32.xlu0 %v212, 126
        %v481 = vpop.permute.xlu0 %480
        %s482 = sld [smem:[#allocation3 + $0x1a]]
        %v483 = vstv %s482
        %v484 = vmul.f32 %v479, %v483
        %v485 = vmul.f32 %v481, %v483
        %v486 = vadd.f32 %v450, %v484
        %v487 = vadd.f32 %v451, %v485
        %488 = vrot.lane.b32.xlu0 %v211, 125
        %v489 = vpop.permute.xlu0 %488
        %490 = vrot.lane.b32.xlu0 %v212, 125
        %v491 = vpop.permute.xlu0 %490
        %s492 = sld [smem:[#allocation3 + $0x1b]]
        %v493 = vstv %s492
        %v494 = vmul.f32 %v489, %v493
        %v495 = vmul.f32 %v491, %v493
        %v496 = vadd.f32 %v460, %v494
        %v497 = vadd.f32 %v461, %v495
        %v498 = vrot.slane %v211, 1
        %v499 = vrot.slane %v212, 1
        %v500 = vrot.slane %v213, 1
        %vm501 = vcmp.lt.s32.totalorder %v218, 7
        %v502 = vsel %vm501, %v499, %v500
        %v503 = vsel %vm501, %v498, %v499
        %504 = vrot.lane.b32.xlu0 %v503, 3
        %v505 = vpop.permute.xlu0 %504
        %506 = vrot.lane.b32.xlu0 %v502, 3
        %v507 = vpop.permute.xlu0 %506
        %s508 = sld [smem:[#allocation3 + $0x1c]]
        %v509 = vstv %s508
        %v510 = vmul.f32 %v505, %v509
        %v511 = vmul.f32 %v507, %v509
        %v512 = vadd.f32 %v466, %v510
        %v513 = vadd.f32 %v467, %v511
        %514 = vrot.lane.b32.xlu0 %v503, 2
        %v515 = vpop.permute.xlu0 %514
        %516 = vrot.lane.b32.xlu0 %v502, 2
        %v517 = vpop.permute.xlu0 %516
        %s518 = sld [smem:[#allocation3 + $0x1d]]
        %v519 = vstv %s518
        %v520 = vmul.f32 %v515, %v519
        %v521 = vmul.f32 %v517, %v519
        %v522 = vadd.f32 %v476, %v520
        %v523 = vadd.f32 %v477, %v521
        %524 = vrot.lane.b32.xlu0 %v503, 1
        %v525 = vpop.permute.xlu0 %524
        %526 = vrot.lane.b32.xlu0 %v502, 1
        %v527 = vpop.permute.xlu0 %526
        %s528 = sld [smem:[#allocation3 + $0x1e]]
        %v529 = vstv %s528
        %v530 = vmul.f32 %v525, %v529
        %v531 = vmul.f32 %v527, %v529
        %v532 = vadd.f32 %v486, %v530
        %v533 = vadd.f32 %v487, %v531
        %s534 = sld [smem:[#allocation3 + $0x1f]]
        %v535 = vstv %s534
        %v536 = vmul.f32 %v503, %v535
        %v537 = vmul.f32 %v502, %v535
        %v538 = vadd.f32 %v496, %v536
        %v539 = vadd.f32 %v497, %v537
        %540 = vrot.lane.b32.xlu0 %v503, 127
        %v541 = vpop.permute.xlu0 %540
        %542 = vrot.lane.b32.xlu0 %v502, 127
        %v543 = vpop.permute.xlu0 %542
        %s544 = sld [smem:[#allocation3 + $0x20]]
        %v545 = vstv %s544
        %v546 = vmul.f32 %v541, %v545
        %v547 = vmul.f32 %v543, %v545
        %v548 = vadd.f32 %v512, %v546
        %v549 = vadd.f32 %v513, %v547
        %550 = vrot.lane.b32.xlu0 %v503, 126
        %v551 = vpop.permute.xlu0 %550
        %552 = vrot.lane.b32.xlu0 %v502, 126
        %v553 = vpop.permute.xlu0 %552
        %s554 = sld [smem:[#allocation3 + $0x21]]
        %v555 = vstv %s554
        %v556 = vmul.f32 %v551, %v555
        %v557 = vmul.f32 %v553, %v555
        %v558 = vadd.f32 %v522, %v556
        %v559 = vadd.f32 %v523, %v557
        %560 = vrot.lane.b32.xlu0 %v503, 125
        %v561 = vpop.permute.xlu0 %560
        %562 = vrot.lane.b32.xlu0 %v502, 125
        %v563 = vpop.permute.xlu0 %562
        %s564 = sld [smem:[#allocation3 + $0x22]]
        %v565 = vstv %s564
        %v566 = vmul.f32 %v561, %v565
        %v567 = vmul.f32 %v563, %v565
        %v568 = vadd.f32 %v532, %v566
        %v569 = vadd.f32 %v533, %v567
        %v570 = vrot.slane %v211, 2
        %v571 = vrot.slane %v212, 2
        %v572 = vrot.slane %v213, 2
        %vm573 = vcmp.lt.s32.totalorder %v218, 6
        %v574 = vsel %vm573, %v571, %v572
        %v575 = vsel %vm573, %v570, %v571
        %576 = vrot.lane.b32.xlu0 %v575, 3
        %v577 = vpop.permute.xlu0 %576
        %578 = vrot.lane.b32.xlu0 %v574, 3
        %v579 = vpop.permute.xlu0 %578
        %s580 = sld [smem:[#allocation3 + $0x23]]
        %v581 = vstv %s580
        %v582 = vmul.f32 %v577, %v581
        %v583 = vmul.f32 %v579, %v581
        %v584 = vadd.f32 %v538, %v582
        %v585 = vadd.f32 %v539, %v583
        %586 = vrot.lane.b32.xlu0 %v575, 2
        %v587 = vpop.permute.xlu0 %586
        %588 = vrot.lane.b32.xlu0 %v574, 2
        %v589 = vpop.permute.xlu0 %588
        %s590 = sld [smem:[#allocation3 + $0x24]]
        %v591 = vstv %s590
        %v592 = vmul.f32 %v587, %v591
        %v593 = vmul.f32 %v589, %v591
        %v594 = vadd.f32 %v548, %v592
        %v595 = vadd.f32 %v549, %v593
        %596 = vrot.lane.b32.xlu0 %v575, 1
        %v597 = vpop.permute.xlu0 %596
        %598 = vrot.lane.b32.xlu0 %v574, 1
        %v599 = vpop.permute.xlu0 %598
        %s600 = sld [smem:[#allocation3 + $0x25]]
        %v601 = vstv %s600
        %v602 = vmul.f32 %v597, %v601
        %v603 = vmul.f32 %v599, %v601
        %v604 = vadd.f32 %v558, %v602
        %v605 = vadd.f32 %v559, %v603
        %s606 = sld [smem:[#allocation3 + $0x26]]
        %v607 = vstv %s606
        %v608 = vmul.f32 %v575, %v607
        %v609 = vmul.f32 %v574, %v607
        %v610 = vadd.f32 %v568, %v608
        %v611 = vadd.f32 %v569, %v609
        %612 = vrot.lane.b32.xlu0 %v575, 127
        %v613 = vpop.permute.xlu0 %612
        %614 = vrot.lane.b32.xlu0 %v574, 127
        %v615 = vpop.permute.xlu0 %614
        %s616 = sld [smem:[#allocation3 + $0x27]]
        %v617 = vstv %s616
        %v618 = vmul.f32 %v613, %v617
        %v619 = vmul.f32 %v615, %v617
        %v620 = vadd.f32 %v584, %v618
        %v621 = vadd.f32 %v585, %v619
        %622 = vrot.lane.b32.xlu0 %v575, 126
        %v623 = vpop.permute.xlu0 %622
        %624 = vrot.lane.b32.xlu0 %v574, 126
        %v625 = vpop.permute.xlu0 %624
        %s626 = sld [smem:[#allocation3 + $0x28]]
        %v627 = vstv %s626
        %v628 = vmul.f32 %v623, %v627
        %v629 = vmul.f32 %v625, %v627
        %v630 = vadd.f32 %v594, %v628
        %v631 = vadd.f32 %v595, %v629
        %632 = vrot.lane.b32.xlu0 %v575, 125
        %v633 = vpop.permute.xlu0 %632
        %634 = vrot.lane.b32.xlu0 %v574, 125
        %v635 = vpop.permute.xlu0 %634
        %s636 = sld [smem:[#allocation3 + $0x29]]
        %v637 = vstv %s636
        %v638 = vmul.f32 %v633, %v637
        %v639 = vmul.f32 %v635, %v637
        %v640 = vadd.f32 %v604, %v638
        %v641 = vadd.f32 %v605, %v639
        %v642 = vrot.slane %v211, 3
        %v643 = vrot.slane %v212, 3
        %v644 = vrot.slane %v213, 3
        %vm645 = vcmp.lt.s32.totalorder %v218, 5
        %v646 = vsel %vm645, %v643, %v644
        %v647 = vsel %vm645, %v642, %v643
        %648 = vrot.lane.b32.xlu0 %v647, 3
        %v649 = vpop.permute.xlu0 %648
        %650 = vrot.lane.b32.xlu0 %v646, 3
        %v651 = vpop.permute.xlu0 %650
        %s652 = sld [smem:[#allocation3 + $0x2a]]
        %v653 = vstv %s652
        %v654 = vmul.f32 %v649, %v653
        %v655 = vmul.f32 %v651, %v653
        %v656 = vadd.f32 %v610, %v654
        %v657 = vadd.f32 %v611, %v655
        %658 = vrot.lane.b32.xlu0 %v647, 2
        %v659 = vpop.permute.xlu0 %658
        %660 = vrot.lane.b32.xlu0 %v646, 2
        %v661 = vpop.permute.xlu0 %660
        %s662 = sld [smem:[#allocation3 + $0x2b]]
        %v663 = vstv %s662
        %v664 = vmul.f32 %v659, %v663
        %v665 = vmul.f32 %v661, %v663
        %v666 = vadd.f32 %v620, %v664
        %v667 = vadd.f32 %v621, %v665
        %668 = vrot.lane.b32.xlu0 %v647, 1
        %v669 = vpop.permute.xlu0 %668
        %670 = vrot.lane.b32.xlu0 %v646, 1
        %v671 = vpop.permute.xlu0 %670
        %s672 = sld [smem:[#allocation3 + $0x2c]]
        %v673 = vstv %s672
        %v674 = vmul.f32 %v669, %v673
        %v675 = vmul.f32 %v671, %v673
        %v676 = vadd.f32 %v630, %v674
        %v677 = vadd.f32 %v631, %v675
        %s678 = sld [smem:[#allocation3 + $0x2d]]
        %v679 = vstv %s678
        %v680 = vmul.f32 %v647, %v679
        %v681 = vmul.f32 %v646, %v679
        %v682 = vadd.f32 %v640, %v680
        %v683 = vadd.f32 %v641, %v681
        %684 = vrot.lane.b32.xlu0 %v647, 127
        %v685 = vpop.permute.xlu0 %684
        %686 = vrot.lane.b32.xlu0 %v646, 127
        %v687 = vpop.permute.xlu0 %686
        %s688 = sld [smem:[#allocation3 + $0x2e]]
        %v689 = vstv %s688
        %v690 = vmul.f32 %v685, %v689
        %v691 = vmul.f32 %v687, %v689
        %v692 = vadd.f32 %v656, %v690
        %v693 = vadd.f32 %v657, %v691
        %694 = vrot.lane.b32.xlu0 %v647, 126
        %v695 = vpop.permute.xlu0 %694
        %696 = vrot.lane.b32.xlu0 %v646, 126
        %v697 = vpop.permute.xlu0 %696
        %s698 = sld [smem:[#allocation3 + $0x2f]]
        %v699 = vstv %s698
        %v700 = vmul.f32 %v695, %v699
        %v701 = vmul.f32 %v697, %v699
        %v702 = vadd.f32 %v666, %v700
        %v703 = vadd.f32 %v667, %v701
        %704 = vrot.lane.b32.xlu0 %v647, 125
        %v705 = vpop.permute.xlu0 %704
        %706 = vrot.lane.b32.xlu0 %v646, 125
        %v707 = vpop.permute.xlu0 %706
        %s708 = sld [smem:[#allocation3 + $0x30]]
        %v709 = vstv %s708
        %v710 = vmul.f32 %v705, %v709
        %v711 = vmul.f32 %v707, %v709
        %v712 = vadd.f32 %v676, %v710
        %v713 = vadd.f32 %v677, %v711
        %v714 = vld [vmem:[%s208] sm:$0xff]
        %v715 = vld [vmem:[%s208 + $0x8] sm:$0xff]
        %v716 = vld [vmem:[%s208 + $0x10] sm:$0xff]
        %v717 = vrot.slane %v714, 5
        %v718 = vrot.slane %v715, 5
        %v719 = vrot.slane %v716, 5
        %v720 = vsel %vm219, %v717, %v718
        %v721 = vsel %vm219, %v719, %v717
        %722 = vrot.lane.b32.xlu0 %v721, 3
        %v723 = vpop.permute.xlu0 %722
        %724 = vrot.lane.b32.xlu0 %v720, 3
        %v725 = vpop.permute.xlu0 %724
        %s726 = sld [smem:[#allocation3 + $0x31]]
        %v727 = vstv %s726
        %v728 = vmul.f32 %v723, %v727
        %v729 = vmul.f32 %v725, %v727
        %v730 = vadd.f32 %v682, %v728
        %v731 = vadd.f32 %v683, %v729
        %732 = vrot.lane.b32.xlu0 %v721, 2
        %v733 = vpop.permute.xlu0 %732
        %734 = vrot.lane.b32.xlu0 %v720, 2
        %v735 = vpop.permute.xlu0 %734
        %s736 = sld [smem:[#allocation3 + $0x32]]
        %v737 = vstv %s736
        %v738 = vmul.f32 %v733, %v737
        %v739 = vmul.f32 %v735, %v737
        %v740 = vadd.f32 %v692, %v738
        %v741 = vadd.f32 %v693, %v739
        %742 = vrot.lane.b32.xlu0 %v721, 1
        %v743 = vpop.permute.xlu0 %742
        %744 = vrot.lane.b32.xlu0 %v720, 1
        %v745 = vpop.permute.xlu0 %744
        %s746 = sld [smem:[#allocation3 + $0x33]]
        %v747 = vstv %s746
        %v748 = vmul.f32 %v743, %v747
        %v749 = vmul.f32 %v745, %v747
        %v750 = vadd.f32 %v702, %v748
        %v751 = vadd.f32 %v703, %v749
        %s752 = sld [smem:[#allocation3 + $0x34]]
        %v753 = vstv %s752
        %v754 = vmul.f32 %v721, %v753
        %v755 = vmul.f32 %v720, %v753
        %v756 = vadd.f32 %v712, %v754
        %v757 = vadd.f32 %v713, %v755
        %758 = vrot.lane.b32.xlu0 %v721, 127
        %v759 = vpop.permute.xlu0 %758
        %760 = vrot.lane.b32.xlu0 %v720, 127
        %v761 = vpop.permute.xlu0 %760
        %s762 = sld [smem:[#allocation3 + $0x35]]
        %v763 = vstv %s762
        %v764 = vmul.f32 %v759, %v763
        %v765 = vmul.f32 %v761, %v763
        %v766 = vadd.f32 %v730, %v764
        %v767 = vadd.f32 %v731, %v765
        %768 = vrot.lane.b32.xlu0 %v721, 126
        %v769 = vpop.permute.xlu0 %768
        %770 = vrot.lane.b32.xlu0 %v720, 126
        %v771 = vpop.permute.xlu0 %770
        %s772 = sld [smem:[#allocation3 + $0x36]]
        %v773 = vstv %s772
        %v774 = vmul.f32 %v769, %v773
        %v775 = vmul.f32 %v771, %v773
        %v776 = vadd.f32 %v740, %v774
        %v777 = vadd.f32 %v741, %v775
        %778 = vrot.lane.b32.xlu0 %v721, 125
        %v779 = vpop.permute.xlu0 %778
        %780 = vrot.lane.b32.xlu0 %v720, 125
        %v781 = vpop.permute.xlu0 %780
        %s782 = sld [smem:[#allocation3 + $0x37]]
        %v783 = vstv %s782
        %v784 = vmul.f32 %v779, %v783
        %v785 = vmul.f32 %v781, %v783
        %v786 = vadd.f32 %v750, %v784
        %v787 = vadd.f32 %v751, %v785
        %v788 = vrot.slane %v714, 6
        %v789 = vrot.slane %v715, 6
        %v790 = vrot.slane %v716, 6
        %v791 = vsel %vm291, %v788, %v789
        %v792 = vsel %vm291, %v790, %v788
        %793 = vrot.lane.b32.xlu0 %v792, 3
        %v794 = vpop.permute.xlu0 %793
        %795 = vrot.lane.b32.xlu0 %v791, 3
        %v796 = vpop.permute.xlu0 %795
        %s797 = sld [smem:[#allocation3 + $0x38]]
        %v798 = vstv %s797
        %v799 = vmul.f32 %v794, %v798
        %v800 = vmul.f32 %v796, %v798
        %v801 = vadd.f32 %v756, %v799
        %v802 = vadd.f32 %v757, %v800
        %803 = vrot.lane.b32.xlu0 %v792, 2
        %v804 = vpop.permute.xlu0 %803
        %805 = vrot.lane.b32.xlu0 %v791, 2
        %v806 = vpop.permute.xlu0 %805
        %s807 = sld [smem:[#allocation3 + $0x39]]
        %v808 = vstv %s807
        %v809 = vmul.f32 %v804, %v808
        %v810 = vmul.f32 %v806, %v808
        %v811 = vadd.f32 %v766, %v809
        %v812 = vadd.f32 %v767, %v810
        %813 = vrot.lane.b32.xlu0 %v792, 1
        %v814 = vpop.permute.xlu0 %813
        %815 = vrot.lane.b32.xlu0 %v791, 1
        %v816 = vpop.permute.xlu0 %815
        %s817 = sld [smem:[#allocation3 + $0x3a]]
        %v818 = vstv %s817
        %v819 = vmul.f32 %v814, %v818
        %v820 = vmul.f32 %v816, %v818
        %v821 = vadd.f32 %v776, %v819
        %v822 = vadd.f32 %v777, %v820
        %s823 = sld [smem:[#allocation3 + $0x3b]]
        %v824 = vstv %s823
        %v825 = vmul.f32 %v792, %v824
        %v826 = vmul.f32 %v791, %v824
        %v827 = vadd.f32 %v786, %v825
        %v828 = vadd.f32 %v787, %v826
        %829 = vrot.lane.b32.xlu0 %v792, 127
        %v830 = vpop.permute.xlu0 %829
        %831 = vrot.lane.b32.xlu0 %v791, 127
        %v832 = vpop.permute.xlu0 %831
        %s833 = sld [smem:[#allocation3 + $0x3c]]
        %v834 = vstv %s833
        %v835 = vmul.f32 %v830, %v834
        %v836 = vmul.f32 %v832, %v834
        %v837 = vadd.f32 %v801, %v835
        %v838 = vadd.f32 %v802, %v836
        %839 = vrot.lane.b32.xlu0 %v792, 126
        %v840 = vpop.permute.xlu0 %839
        %841 = vrot.lane.b32.xlu0 %v791, 126
        %v842 = vpop.permute.xlu0 %841
        %s843 = sld [smem:[#allocation3 + $0x3d]]
        %v844 = vstv %s843
        %v845 = vmul.f32 %v840, %v844
        %v846 = vmul.f32 %v842, %v844
        %v847 = vadd.f32 %v811, %v845
        %v848 = vadd.f32 %v812, %v846
        %849 = vrot.lane.b32.xlu0 %v792, 125
        %v850 = vpop.permute.xlu0 %849
        %851 = vrot.lane.b32.xlu0 %v791, 125
        %v852 = vpop.permute.xlu0 %851
        %s853 = sld [smem:[#allocation3 + $0x3e]]
        %v854 = vstv %s853
        %v855 = vmul.f32 %v850, %v854
        %v856 = vmul.f32 %v852, %v854
        %v857 = vadd.f32 %v821, %v855
        %v858 = vadd.f32 %v822, %v856
        %v859 = vrot.slane %v714, 7
        %v860 = vrot.slane %v715, 7
        %v861 = vrot.slane %v716, 7
        %v862 = vsel %vm363, %v859, %v860
        %v863 = vsel %vm363, %v861, %v859
        %864 = vrot.lane.b32.xlu0 %v863, 3
        %v865 = vpop.permute.xlu0 %864
        %866 = vrot.lane.b32.xlu0 %v862, 3
        %v867 = vpop.permute.xlu0 %866
        %s868 = sld [smem:[#allocation3 + $0x3f]]
        %v869 = vstv %s868
        %v870 = vmul.f32 %v865, %v869
        %v871 = vmul.f32 %v867, %v869
        %v872 = vadd.f32 %v827, %v870
        %v873 = vadd.f32 %v828, %v871
        %874 = vrot.lane.b32.xlu0 %v863, 2
        %v875 = vpop.permute.xlu0 %874
        %876 = vrot.lane.b32.xlu0 %v862, 2
        %v877 = vpop.permute.xlu0 %876
        %s878 = sld [smem:[#allocation3 + $0x40]]
        %v879 = vstv %s878
        %v880 = vmul.f32 %v875, %v879
        %v881 = vmul.f32 %v877, %v879
        %v882 = vadd.f32 %v837, %v880
        %v883 = vadd.f32 %v838, %v881
        %884 = vrot.lane.b32.xlu0 %v863, 1
        %v885 = vpop.permute.xlu0 %884
        %886 = vrot.lane.b32.xlu0 %v862, 1
        %v887 = vpop.permute.xlu0 %886
        %s888 = sld [smem:[#allocation3 + $0x41]]
        %v889 = vstv %s888
        %v890 = vmul.f32 %v885, %v889
        %v891 = vmul.f32 %v887, %v889
        %v892 = vadd.f32 %v847, %v890
        %v893 = vadd.f32 %v848, %v891
        %s894 = sld [smem:[#allocation3 + $0x42]]
        %v895 = vstv %s894
        %v896 = vmul.f32 %v863, %v895
        %v897 = vmul.f32 %v862, %v895
        %v898 = vadd.f32 %v857, %v896
        %v899 = vadd.f32 %v858, %v897
        %900 = vrot.lane.b32.xlu0 %v863, 127
        %v901 = vpop.permute.xlu0 %900
        %902 = vrot.lane.b32.xlu0 %v862, 127
        %v903 = vpop.permute.xlu0 %902
        %s904 = sld [smem:[#allocation3 + $0x43]]
        %v905 = vstv %s904
        %v906 = vmul.f32 %v901, %v905
        %v907 = vmul.f32 %v903, %v905
        %v908 = vadd.f32 %v872, %v906
        %v909 = vadd.f32 %v873, %v907
        %910 = vrot.lane.b32.xlu0 %v863, 126
        %v911 = vpop.permute.xlu0 %910
        %912 = vrot.lane.b32.xlu0 %v862, 126
        %v913 = vpop.permute.xlu0 %912
        %s914 = sld [smem:[#allocation3 + $0x44]]
        %v915 = vstv %s914
        %v916 = vmul.f32 %v911, %v915
        %v917 = vmul.f32 %v913, %v915
        %v918 = vadd.f32 %v882, %v916
        %v919 = vadd.f32 %v883, %v917
        %920 = vrot.lane.b32.xlu0 %v863, 125
        %v921 = vpop.permute.xlu0 %920
        %922 = vrot.lane.b32.xlu0 %v862, 125
        %v923 = vpop.permute.xlu0 %922
        %s924 = sld [smem:[#allocation3 + $0x45]]
        %v925 = vstv %s924
        %v926 = vmul.f32 %v921, %v925
        %v927 = vmul.f32 %v923, %v925
        %v928 = vadd.f32 %v892, %v926
        %v929 = vadd.f32 %v893, %v927
        %930 = vrot.lane.b32.xlu0 %v714, 3
        %v931 = vpop.permute.xlu0 %930
        %932 = vrot.lane.b32.xlu0 %v715, 3
        %v933 = vpop.permute.xlu0 %932
        %s934 = sld [smem:[#allocation3 + $0x46]]
        %v935 = vstv %s934
        %v936 = vmul.f32 %v931, %v935
        %v937 = vmul.f32 %v933, %v935
        %v938 = vadd.f32 %v898, %v936
        %v939 = vadd.f32 %v899, %v937
        %940 = vrot.lane.b32.xlu0 %v714, 2
        %v941 = vpop.permute.xlu0 %940
        %942 = vrot.lane.b32.xlu0 %v715, 2
        %v943 = vpop.permute.xlu0 %942
        %s944 = sld [smem:[#allocation3 + $0x47]]
        %v945 = vstv %s944
        %v946 = vmul.f32 %v941, %v945
        %v947 = vmul.f32 %v943, %v945
        %v948 = vadd.f32 %v908, %v946
        %v949 = vadd.f32 %v909, %v947
        %950 = vrot.lane.b32.xlu0 %v714, 1
        %v951 = vpop.permute.xlu0 %950
        %952 = vrot.lane.b32.xlu0 %v715, 1
        %v953 = vpop.permute.xlu0 %952
        %s954 = sld [smem:[#allocation3 + $0x48]]
        %v955 = vstv %s954
        %v956 = vmul.f32 %v951, %v955
        %v957 = vmul.f32 %v953, %v955
        %v958 = vadd.f32 %v918, %v956
        %v959 = vadd.f32 %v919, %v957
        %s960 = sld [smem:[#allocation3 + $0x49]]
        %v961 = vstv %s960
        %v962 = vmul.f32 %v714, %v961
        %v963 = vmul.f32 %v715, %v961
        %v964 = vadd.f32 %v928, %v962
        %v965 = vadd.f32 %v929, %v963
        %966 = vrot.lane.b32.xlu0 %v714, 127
        %v967 = vpop.permute.xlu0 %966
        %968 = vrot.lane.b32.xlu0 %v715, 127
        %v969 = vpop.permute.xlu0 %968
        %s970 = sld [smem:[#allocation3 + $0x4a]]
        %v971 = vstv %s970
        %v972 = vmul.f32 %v967, %v971
        %v973 = vmul.f32 %v969, %v971
        %v974 = vadd.f32 %v938, %v972
        %v975 = vadd.f32 %v939, %v973
        %976 = vrot.lane.b32.xlu0 %v714, 126
        %v977 = vpop.permute.xlu0 %976
        %978 = vrot.lane.b32.xlu0 %v715, 126
        %v979 = vpop.permute.xlu0 %978
        %s980 = sld [smem:[#allocation3 + $0x4b]]
        %v981 = vstv %s980
        %v982 = vmul.f32 %v977, %v981
        %v983 = vmul.f32 %v979, %v981
        %v984 = vadd.f32 %v948, %v982
        %v985 = vadd.f32 %v949, %v983
        %986 = vrot.lane.b32.xlu0 %v714, 125
        %v987 = vpop.permute.xlu0 %986
        %988 = vrot.lane.b32.xlu0 %v715, 125
        %v989 = vpop.permute.xlu0 %988
        %s990 = sld [smem:[#allocation3 + $0x4c]]
        %v991 = vstv %s990
        %v992 = vmul.f32 %v987, %v991
        %v993 = vmul.f32 %v989, %v991
        %v994 = vadd.f32 %v958, %v992
        %v995 = vadd.f32 %v959, %v993
        %v996 = vrot.slane %v714, 1
        %v997 = vrot.slane %v715, 1
        %v998 = vrot.slane %v716, 1
        %v999 = vsel %vm501, %v997, %v998
        %v1000 = vsel %vm501, %v996, %v997
        %1001 = vrot.lane.b32.xlu0 %v1000, 3
        %v1002 = vpop.permute.xlu0 %1001
        %1003 = vrot.lane.b32.xlu0 %v999, 3
        %v1004 = vpop.permute.xlu0 %1003
        %s1005 = sld [smem:[#allocation3 + $0x4d]]
        %v1006 = vstv %s1005
        %v1007 = vmul.f32 %v1002, %v1006
        %v1008 = vmul.f32 %v1004, %v1006
        %v1009 = vadd.f32 %v964, %v1007
        %v1010 = vadd.f32 %v965, %v1008
        %1011 = vrot.lane.b32.xlu0 %v1000, 2
        %v1012 = vpop.permute.xlu0 %1011
        %1013 = vrot.lane.b32.xlu0 %v999, 2
        %v1014 = vpop.permute.xlu0 %1013
        %s1015 = sld [smem:[#allocation3 + $0x4e]]
        %v1016 = vstv %s1015
        %v1017 = vmul.f32 %v1012, %v1016
        %v1018 = vmul.f32 %v1014, %v1016
        %v1019 = vadd.f32 %v974, %v1017
        %v1020 = vadd.f32 %v975, %v1018
        %1021 = vrot.lane.b32.xlu0 %v1000, 1
        %v1022 = vpop.permute.xlu0 %1021
        %1023 = vrot.lane.b32.xlu0 %v999, 1
        %v1024 = vpop.permute.xlu0 %1023
        %s1025 = sld [smem:[#allocation3 + $0x4f]]
        %v1026 = vstv %s1025
        %v1027 = vmul.f32 %v1022, %v1026
        %v1028 = vmul.f32 %v1024, %v1026
        %v1029 = vadd.f32 %v984, %v1027
        %v1030 = vadd.f32 %v985, %v1028
        %s1031 = sld [smem:[#allocation3 + $0x50]]
        %v1032 = vstv %s1031
        %v1033 = vmul.f32 %v1000, %v1032
        %v1034 = vmul.f32 %v999, %v1032
        %v1035 = vadd.f32 %v994, %v1033
        %v1036 = vadd.f32 %v995, %v1034
        %1037 = vrot.lane.b32.xlu0 %v1000, 127
        %v1038 = vpop.permute.xlu0 %1037
        %1039 = vrot.lane.b32.xlu0 %v999, 127
        %v1040 = vpop.permute.xlu0 %1039
        %s1041 = sld [smem:[#allocation3 + $0x51]]
        %v1042 = vstv %s1041
        %v1043 = vmul.f32 %v1038, %v1042
        %v1044 = vmul.f32 %v1040, %v1042
        %v1045 = vadd.f32 %v1009, %v1043
        %v1046 = vadd.f32 %v1010, %v1044
        %1047 = vrot.lane.b32.xlu0 %v1000, 126
        %v1048 = vpop.permute.xlu0 %1047
        %1049 = vrot.lane.b32.xlu0 %v999, 126
        %v1050 = vpop.permute.xlu0 %1049
        %s1051 = sld [smem:[#allocation3 + $0x52]]
        %v1052 = vstv %s1051
        %v1053 = vmul.f32 %v1048, %v1052
        %v1054 = vmul.f32 %v1050, %v1052
        %v1055 = vadd.f32 %v1019, %v1053
        %v1056 = vadd.f32 %v1020, %v1054
        %1057 = vrot.lane.b32.xlu0 %v1000, 125
        %v1058 = vpop.permute.xlu0 %1057
        %1059 = vrot.lane.b32.xlu0 %v999, 125
        %v1060 = vpop.permute.xlu0 %1059
        %s1061 = sld [smem:[#allocation3 + $0x53]]
        %v1062 = vstv %s1061
        %v1063 = vmul.f32 %v1058, %v1062
        %v1064 = vmul.f32 %v1060, %v1062
        %v1065 = vadd.f32 %v1029, %v1063
        %v1066 = vadd.f32 %v1030, %v1064
        %v1067 = vrot.slane %v714, 2
        %v1068 = vrot.slane %v715, 2
        %v1069 = vrot.slane %v716, 2
        %v1070 = vsel %vm573, %v1068, %v1069
        %v1071 = vsel %vm573, %v1067, %v1068
        %1072 = vrot.lane.b32.xlu0 %v1071, 3
        %v1073 = vpop.permute.xlu0 %1072
        %1074 = vrot.lane.b32.xlu0 %v1070, 3
        %v1075 = vpop.permute.xlu0 %1074
        %s1076 = sld [smem:[#allocation3 + $0x54]]
        %v1077 = vstv %s1076
        %v1078 = vmul.f32 %v1073, %v1077
        %v1079 = vmul.f32 %v1075, %v1077
        %v1080 = vadd.f32 %v1035, %v1078
        %v1081 = vadd.f32 %v1036, %v1079
        %1082 = vrot.lane.b32.xlu0 %v1071, 2
        %v1083 = vpop.permute.xlu0 %1082
        %1084 = vrot.lane.b32.xlu0 %v1070, 2
        %v1085 = vpop.permute.xlu0 %1084
        %s1086 = sld [smem:[#allocation3 + $0x55]]
        %v1087 = vstv %s1086
        %v1088 = vmul.f32 %v1083, %v1087
        %v1089 = vmul.f32 %v1085, %v1087
        %v1090 = vadd.f32 %v1045, %v1088
        %v1091 = vadd.f32 %v1046, %v1089
        %1092 = vrot.lane.b32.xlu0 %v1071, 1
        %v1093 = vpop.permute.xlu0 %1092
        %1094 = vrot.lane.b32.xlu0 %v1070, 1
        %v1095 = vpop.permute.xlu0 %1094
        %s1096 = sld [smem:[#allocation3 + $0x56]]
        %v1097 = vstv %s1096
        %v1098 = vmul.f32 %v1093, %v1097
        %v1099 = vmul.f32 %v1095, %v1097
        %v1100 = vadd.f32 %v1055, %v1098
        %v1101 = vadd.f32 %v1056, %v1099
        %s1102 = sld [smem:[#allocation3 + $0x57]]
        %v1103 = vstv %s1102
        %v1104 = vmul.f32 %v1071, %v1103
        %v1105 = vmul.f32 %v1070, %v1103
        %v1106 = vadd.f32 %v1065, %v1104
        %v1107 = vadd.f32 %v1066, %v1105
        %1108 = vrot.lane.b32.xlu0 %v1071, 127
        %v1109 = vpop.permute.xlu0 %1108
        %1110 = vrot.lane.b32.xlu0 %v1070, 127
        %v1111 = vpop.permute.xlu0 %1110
        %s1112 = sld [smem:[#allocation3 + $0x58]]
        %v1113 = vstv %s1112
        %v1114 = vmul.f32 %v1109, %v1113
        %v1115 = vmul.f32 %v1111, %v1113
        %v1116 = vadd.f32 %v1080, %v1114
        %v1117 = vadd.f32 %v1081, %v1115
        %1118 = vrot.lane.b32.xlu0 %v1071, 126
        %v1119 = vpop.permute.xlu0 %1118
        %1120 = vrot.lane.b32.xlu0 %v1070, 126
        %v1121 = vpop.permute.xlu0 %1120
        %s1122 = sld [smem:[#allocation3 + $0x59]]
        %v1123 = vstv %s1122
        %v1124 = vmul.f32 %v1119, %v1123
        %v1125 = vmul.f32 %v1121, %v1123
        %v1126 = vadd.f32 %v1090, %v1124
        %v1127 = vadd.f32 %v1091, %v1125
        %1128 = vrot.lane.b32.xlu0 %v1071, 125
        %v1129 = vpop.permute.xlu0 %1128
        %1130 = vrot.lane.b32.xlu0 %v1070, 125
        %v1131 = vpop.permute.xlu0 %1130
        %s1132 = sld [smem:[#allocation3 + $0x5a]]
        %v1133 = vstv %s1132
        %v1134 = vmul.f32 %v1129, %v1133
        %v1135 = vmul.f32 %v1131, %v1133
        %v1136 = vadd.f32 %v1100, %v1134
        %v1137 = vadd.f32 %v1101, %v1135
        %v1138 = vrot.slane %v714, 3
        %v1139 = vrot.slane %v715, 3
        %v1140 = vrot.slane %v716, 3
        %v1141 = vsel %vm645, %v1139, %v1140
        %v1142 = vsel %vm645, %v1138, %v1139
        %1143 = vrot.lane.b32.xlu0 %v1142, 3
        %v1144 = vpop.permute.xlu0 %1143
        %1145 = vrot.lane.b32.xlu0 %v1141, 3
        %v1146 = vpop.permute.xlu0 %1145
        %s1147 = sld [smem:[#allocation3 + $0x5b]]
        %v1148 = vstv %s1147
        %v1149 = vmul.f32 %v1144, %v1148
        %v1150 = vmul.f32 %v1146, %v1148
        %v1151 = vadd.f32 %v1106, %v1149
        %v1152 = vadd.f32 %v1107, %v1150
        %1153 = vrot.lane.b32.xlu0 %v1142, 2
        %v1154 = vpop.permute.xlu0 %1153
        %1155 = vrot.lane.b32.xlu0 %v1141, 2
        %v1156 = vpop.permute.xlu0 %1155
        %s1157 = sld [smem:[#allocation3 + $0x5c]]
        %v1158 = vstv %s1157
        %v1159 = vmul.f32 %v1154, %v1158
        %v1160 = vmul.f32 %v1156, %v1158
        %v1161 = vadd.f32 %v1116, %v1159
        %v1162 = vadd.f32 %v1117, %v1160
        %1163 = vrot.lane.b32.xlu0 %v1142, 1
        %v1164 = vpop.permute.xlu0 %1163
        %1165 = vrot.lane.b32.xlu0 %v1141, 1
        %v1166 = vpop.permute.xlu0 %1165
        %s1167 = sld [smem:[#allocation3 + $0x5d]]
        %v1168 = vstv %s1167
        %v1169 = vmul.f32 %v1164, %v1168
        %v1170 = vmul.f32 %v1166, %v1168
        %v1171 = vadd.f32 %v1126, %v1169
        %v1172 = vadd.f32 %v1127, %v1170
        %s1173 = sld [smem:[#allocation3 + $0x5e]]
        %v1174 = vstv %s1173
        %v1175 = vmul.f32 %v1142, %v1174
        %v1176 = vmul.f32 %v1141, %v1174
        %v1177 = vadd.f32 %v1136, %v1175
        %v1178 = vadd.f32 %v1137, %v1176
        %1179 = vrot.lane.b32.xlu0 %v1142, 127
        %v1180 = vpop.permute.xlu0 %1179
        %1181 = vrot.lane.b32.xlu0 %v1141, 127
        %v1182 = vpop.permute.xlu0 %1181
        %s1183 = sld [smem:[#allocation3 + $0x5f]]
        %v1184 = vstv %s1183
        %v1185 = vmul.f32 %v1180, %v1184
        %v1186 = vmul.f32 %v1182, %v1184
        %v1187 = vadd.f32 %v1151, %v1185
        %v1188 = vadd.f32 %v1152, %v1186
        %1189 = vrot.lane.b32.xlu0 %v1142, 126
        %v1190 = vpop.permute.xlu0 %1189
        %1191 = vrot.lane.b32.xlu0 %v1141, 126
        %v1192 = vpop.permute.xlu0 %1191
        %s1193 = sld [smem:[#allocation3 + $0x60]]
        %v1194 = vstv %s1193
        %v1195 = vmul.f32 %v1190, %v1194
        %v1196 = vmul.f32 %v1192, %v1194
        %v1197 = vadd.f32 %v1161, %v1195
        %v1198 = vadd.f32 %v1162, %v1196
        %1199 = vrot.lane.b32.xlu0 %v1142, 125
        %v1200 = vpop.permute.xlu0 %1199
        %1201 = vrot.lane.b32.xlu0 %v1141, 125
        %v1202 = vpop.permute.xlu0 %1201
        %s1203 = sld [smem:[#allocation3 + $0x61]]
        %v1204 = vstv %s1203
        %v1205 = vmul.f32 %v1200, %v1204
        %v1206 = vmul.f32 %v1202, %v1204
        %v1207 = vadd.f32 %v1171, %v1205
        %v1208 = vadd.f32 %v1172, %v1206
        %v1209 = vadd.f32 %v1197, %v1207
        %v1210 = vadd.f32 %v1198, %v1208
        %v1211 = vadd.f32 %v1177, %v1187
        %v1212 = vadd.f32 %v1178, %v1188
        %v1213 = vadd.f32 %v1209, %v1211
        %v1214 = vadd.f32 %v1210, %v1212
        %v1215 = vxor.u32 %v1213, 2147483648
        %v1216 = vxor.u32 %v1214, 2147483648
        %v1217 = vmul.f32 %v1215, 1.442695
        %v1218 = vpow.pop %v1217
        %v1219 = vmul.f32 %v1216, 1.442695
        %v1220 = vpow.pop %v1219
        %v1221 = vadd.f32 %v1218, 1.0
        %v1222 = vadd.f32 %v1220, 1.0
        %v1223 = vrcp.pop %v1221
        %v1224 = vmul.f32 1.0, %v1223
        %v1225 = vrcp.pop %v1222
        %v1226 = vmul.f32 1.0, %v1225
        %v1227 = vld [vmem:[%s152] sm:$0xff]
        %v1228 = vld [vmem:[%s152 + $0x8] sm:$0xff]
        %v1229 = vmul.f32 %v1227, %v1224
        %v1230 = vmul.f32 %v1228, %v1226
        %1231 = vst.msk [vmem:[%s173] sm:$0xff] %vm205, %v1229
        %1232 = vst.msk [vmem:[%s173 + $0x8] sm:$0xff] %vm205, %v1230
        %v1233 = vld [vmem:[%s176] sm:$0xff]
        %v1234 = vld [vmem:[%s176 + $0x8] sm:$0xff]
        %v1235 = vmul.f32 %v1233, %v1224
        %v1236 = vmul.f32 %v1234, %v1226
        %s1237 = scalar_lea.vmem %s173, 16 [#allocation8]
        %1238 = vst.msk [vmem:[%s1237] sm:$0xff] %vm205, %v1235
        %1239 = vst.msk [vmem:[%s1237 + $0x8] sm:$0xff] %vm205, %v1236
        %v1240 = vld [vmem:[%s183] sm:$0xff]
        %v1241 = vld [vmem:[%s183 + $0x8] sm:$0xff]
        %v1242 = vmul.f32 %v1240, %v1224
        %v1243 = vmul.f32 %v1241, %v1226
        %s1244 = scalar_lea.vmem %s173, 32 [#allocation8]
        %1245 = vst.msk [vmem:[%s1244] sm:$0xff] %vm205, %v1242
        %1246 = vst.msk [vmem:[%s1244 + $0x8] sm:$0xff] %vm205, %v1243
        %v1247 = vld [vmem:[%s190] sm:$0xff]
        %v1248 = vld [vmem:[%s190 + $0x8] sm:$0xff]
        %v1249 = vmul.f32 %v1247, %v1224
        %v1250 = vmul.f32 %v1248, %v1226
        %s1251 = scalar_lea.vmem %s173, 48 [#allocation8]
        %1252 = vst.msk [vmem:[%s1251] sm:$0xff] %vm205, %v1249
        %1253 = vst.msk [vmem:[%s1251 + $0x8] sm:$0xff] %vm205, %v1250
        %s1254 = sand.u32 %s75, 1
        %s1255 = scalar_lea.sflag [#allocation5], %s1254
        %s1256 = sand.u32 %s75, 1
        %s1257 = smul.addr %s1256, 64
        %s1258 = scalar_lea.vmem [#allocation8], %s1257
        // Predicated region
        $region37: #{tpu_custom_call.1} parent=27 // pred_check
          %p1259 = pneg %p85
        $region38: #{tpu_custom_call.1} parent=27 // pred_check_branch
          %1261 = sbr.rel (%p1259) target = $region40
        $region39: #{tpu_custom_call.1} parent=27 // pred_region
          %s1263 = ssub.s32 1024, 1024
          %1264 = vsyncadd %s1255, %s1263
          %s1265 = smul.addr %s20, 8
          %s1266 = smul.addr %s1265, 128
          %s1267 = scalar_lea.hbm %s2, %s1266
          %s1268 = sshll.u32 %s1258, 4
          %s1269 = int_to_ptr.vmem [resolvable:$true] %s1268
          %1274 = dma.vmem_to_hbm [thread:$0]  %s1269, 1024, %s1267, %s1255, 128, 128, 8
        $region40: #{tpu_custom_call.1} parent=27 // pred_fallthru
          _
      $region28: #{tpu_custom_call.1} parent=5 // pred_fallthru
        _
      %p1275 = scmp.le.s32.totalorder 2, %s15
      // Predicated region
      $region41: #{tpu_custom_call.1} parent=5 // pred_check
        %p1276 = pneg %p1275
      $region42: #{tpu_custom_call.1} parent=5 // pred_check_branch
        %1278 = sbr.rel (%p1276) target = $region44
      $region43: #{tpu_custom_call.1} parent=5 // pred_region
        %s1279 = ssub.s32 %s15, 2
        // Predicated region
        $region45: #{tpu_custom_call.1} parent=43 // pred_check
          %p1280 = pneg %p91
        $region46: #{tpu_custom_call.1} parent=43 // pred_check_branch
          %1282 = sbr.rel (%p1280) target = $region48
        $region47: #{tpu_custom_call.1} parent=43 // pred_region
          %s1283 = sand.u32 %s76, 1
          %s1284 = scalar_lea.sflag [#allocation5], %s1283
          %s1285 = sand.u32 %s76, 1
          %s1286 = smul.addr %s1285, 64
          %s1287 = scalar_lea.vmem [#allocation8], %s1286
          %1288 = dma.done %s1284, 1024
        $region48: #{tpu_custom_call.1} parent=43 // pred_fallthru
          _
      $region44: #{tpu_custom_call.1} parent=5 // pred_fallthru
        _
    $region6: #{tpu_custom_call.1} parent=1 // loop_footer
      %s19 = sadd.s32 1, %s15
    $region7: #{tpu_custom_call.1} parent=1 // loop_footer_branch
      %14 = sbr.rel target = $region3
    $region8: #{tpu_custom_call.1} parent=1 // loop_exit
      _
    %1289 = vsyncpa [#allocation4], 1
    %s1290 = scalar_lea.sflag [#allocation4], 1
    %1291 = vsyncpa %s1290, 1
    %1292 = vsyncpa [#allocation5], 1
    %s1293 = scalar_lea.sflag [#allocation5], 1
    %1294 = vsyncpa %s1293, 1
    %1295 = vsyncpa [#allocation6], 1
    %s1296 = scalar_lea.sflag [#allocation6], 1
    %1297 = vsyncpa %s1296, 1

</llo_original>
